<compile_context>
chip_gen: v7x
topology: tpu7x:2x2x1
jax: 0.10.0
libtpu: 0.0.40
codegen_flags: <defaults>
</compile_context>

<pallas_src>
import functools
from typing import NamedTuple

import jax
import jax.numpy as jnp
from jax.experimental import pallas as pl
from jax.experimental.pallas import tpu as pltpu


# ---------------------------------------------------------------------------
# Shape bookkeeping
# ---------------------------------------------------------------------------
def _round_up(x, m):
    return (x + m - 1) // m * m


class SCDims(NamedTuple):
    n_rows: int        # batch * n_agents (valid rows)
    np_rows: int       # rows padded to a multiple of 8 sublanes
    lstm_in: int
    dlstm_in: int
    lstm_hidden: int
    dlstm_hidden: int
    n_actions: int
    dlstm_out: int
    latent: int
    horizon: int
    in_pad: int        # common padded input-feature dim (multiple of 128)
    h_pad: int         # common padded hidden dim (multiple of 128)
    out_pad: int       # common padded output dim (multiple of 128)
    g_pad: int         # padded latent/goal dim (multiple of 128)


def make_dims(batch_size, n_agents, lstm_in, dlstm_in, lstm_hidden, dlstm_hidden,
              n_actions, dlstm_out, latent, horizon):
    n_rows = batch_size * n_agents
    return SCDims(
        n_rows=n_rows,
        np_rows=_round_up(n_rows, 8),
        lstm_in=lstm_in, dlstm_in=dlstm_in,
        lstm_hidden=lstm_hidden, dlstm_hidden=dlstm_hidden,
        n_actions=n_actions, dlstm_out=dlstm_out, latent=latent, horizon=horizon,
        in_pad=_round_up(max(lstm_in, dlstm_in), 128),
        h_pad=_round_up(max(lstm_hidden, dlstm_hidden), 128),
        out_pad=_round_up(max(n_actions, dlstm_out), 128),
        g_pad=_round_up(latent, 128),
    )


# ---------------------------------------------------------------------------
# In-kernel math (shared by the single-step and rollout kernels)
# ---------------------------------------------------------------------------
def _lstm_branch_step(x, h, c, w1, b1, wih, bih, whh, bhh, w2, b2, *, h_pad, cdt):
    """fc1 + ReLU -> LSTMCell -> fc2 for one branch.

    Matmul operands are cast to `cdt` (bf16 on v5e/v6e/v7x for the fast MXU path);
    accumulation and all gate/elementwise math stay f32."""
    z = jnp.dot(x.astype(cdt), w1, preferred_element_type=jnp.float32) + b1
    z = jnp.maximum(z, 0.0)
    gates = (jnp.dot(z.astype(cdt), wih, preferred_element_type=jnp.float32) + bih
             + jnp.dot(h.astype(cdt), whh, preferred_element_type=jnp.float32) + bhh)
    # PyTorch gate order [i, f, g, o]; each gate spans h_pad (=128k) lanes -> tile-aligned.
    i_g = jax.nn.sigmoid(gates[:, 0 * h_pad:1 * h_pad])
    f_g = jax.nn.sigmoid(gates[:, 1 * h_pad:2 * h_pad])
    g_g = jnp.tanh(gates[:, 2 * h_pad:3 * h_pad])
    o_g = jax.nn.sigmoid(gates[:, 3 * h_pad:4 * h_pad])
    c_new = f_g * c + i_g * g_g
    h_new = o_g * jnp.tanh(c_new)
    q = jnp.dot(h_new.astype(cdt), w2, preferred_element_type=jnp.float32) + b2
    return q, h_new, c_new


def _goal_softmax(goals, wg, q_l, *, n_actions, cdt):
    """softmax(g_lin_trans(goals) * q_lstm) with padded action lanes masked out.
    Exact normalization (probs feed a policy / sampler)."""
    w_goals = jnp.dot(goals.astype(cdt), wg, preferred_element_type=jnp.float32)
    logits = w_goals * q_l
    lane = jax.lax.broadcasted_iota(jnp.int32, logits.shape, 1)
    logits = jnp.where(lane < n_actions, logits, -1e30)
    m = jnp.max(logits, axis=-1, keepdims=True)
    e = jnp.exp(logits - m)
    return e / jnp.sum(e, axis=-1, keepdims=True)


# ---------------------------------------------------------------------------
# Kernel 1: single fused SCAgent step (module-faithful forward)
# ---------------------------------------------------------------------------
def _sc_step_kernel(tick_ref,
                    xl_ref, xd_ref, goals_ref, hl_ref, cl_ref, dh_ref, dc_ref,
                    w1_ref, b1_ref, wih_ref, bih_ref, whh_ref, bhh_ref, w2_ref, b2_ref, wg_ref,
                    probs_ref, qd_ref, hl_out_ref, cl_out_ref, dh_out_ref, dc_out_ref,
                    *, n_actions, compute_dtype):
    del tick_ref  # consumed only by the dh/dc BlockSpec index_maps
    hp = hl_ref.shape[-1]

    # Branch 0: LSTMAgent.
    q_l, h_l_new, c_l_new = _lstm_branch_step(
        xl_ref[...], hl_ref[...], cl_ref[...],
        w1_ref[0], b1_ref[0], wih_ref[0], bih_ref[0], whh_ref[0], bhh_ref[0],
        w2_ref[0], b2_ref[0], h_pad=hp, cdt=compute_dtype)

    # Branch 1: DilatedLSTMAgent (dh_ref/dc_ref hold only the slot at `tick`).
    q_d, h_d_new, c_d_new = _lstm_branch_step(
        xd_ref[...], dh_ref[0], dc_ref[0],
        w1_ref[1], b1_ref[1], wih_ref[1], bih_ref[1], whh_ref[1], bhh_ref[1],
        w2_ref[1], b2_ref[1], h_pad=hp, cdt=compute_dtype)

    probs_ref[...] = _goal_softmax(goals_ref[...], wg_ref[...], q_l,
                                   n_actions=n_actions, cdt=compute_dtype)
    qd_ref[...] = q_d
    hl_out_ref[...] = h_l_new
    cl_out_ref[...] = c_l_new
    # Aliased, tick-indexed outputs: only this (NP, HP) slot is written back to HBM.
    dh_out_ref[0] = h_d_new
    dc_out_ref[0] = c_d_new


# ---------------------------------------------------------------------------
# Kernel 2: T-step rollout in one pallas_call (weights VMEM-resident)
# ---------------------------------------------------------------------------
def _sc_rollout_kernel(ticks_ref,
                       xl_ref, xd_ref, goals_ref, h0_ref, c0_ref, dh0_ref, dc0_ref,
                       w1_ref, b1_ref, wih_ref, bih_ref, whh_ref, bhh_ref, w2_ref, b2_ref, wg_ref,
                       probs_ref, qd_ref, hf_ref, cf_ref, dhf_ref, dcf_ref,
                       h_sc, c_sc, dh_sc, dc_sc,
                       *, n_actions, compute_dtype):
    t = pl.program_id(0)
    hp = h_sc.shape[-1]

    @pl.when(t == 0)
    def _():  # load the recurrent state into VMEM scratch once
        h_sc[...] = h0_ref[...]
        c_sc[...] = c0_ref[...]
        dh_sc[...] = dh0_ref[...]
        dc_sc[...] = dc0_ref[...]

    tick = ticks_ref[t]

    q_l, h_l_new, c_l_new = _lstm_branch_step(
        xl_ref[0], h_sc[...], c_sc[...],
        w1_ref[0], b1_ref[0], wih_ref[0], bih_ref[0], whh_ref[0], bhh_ref[0],
        w2_ref[0], b2_ref[0], h_pad=hp, cdt=compute_dtype)
    q_d, h_d_new, c_d_new = _lstm_branch_step(
        xd_ref[0], dh_sc[tick], dc_sc[tick],
        w1_ref[1], b1_ref[1], wih_ref[1], bih_ref[1], whh_ref[1], bhh_ref[1],
        w2_ref[1], b2_ref[1], h_pad=hp, cdt=compute_dtype)

    h_sc[...] = h_l_new
    c_sc[...] = c_l_new
    dh_sc[tick] = h_d_new
    dc_sc[tick] = c_d_new

    probs_ref[0] = _goal_softmax(goals_ref[0], wg_ref[...], q_l,
                                 n_actions=n_actions, cdt=compute_dtype)
    qd_ref[0] = q_d

    @pl.when(t == pl.num_programs(0) - 1)
    def _():  # write the carried state back to HBM once per rollout
        hf_ref[...] = h_sc[...]
        cf_ref[...] = c_sc[...]
        dhf_ref[...] = dh_sc[...]
        dcf_ref[...] = dc_sc[...]


# ---------------------------------------------------------------------------
# Shared specs / helpers
# ---------------------------------------------------------------------------
def _weight_specs(dims: SCDims):
    INP, HP, OP, GP = dims.in_pad, dims.h_pad, dims.out_pad, dims.g_pad
    c3 = lambda i, t: (0, 0, 0)
    c2 = lambda i, t: (0, 0)
    # Constant index maps -> blocks stay VMEM-resident across the whole grid (no re-DMA).
    # For production hidden sizes on v7x (64 MiB VMEM), also set pipeline_mode=pl.Buffered(1)
    # here to single-buffer the weights.
    return [
        pl.BlockSpec((2, INP, HP), c3),        # w1
        pl.BlockSpec((2, 1, HP), c3),          # b1
        pl.BlockSpec((2, HP, 4 * HP), c3),     # wih
        pl.BlockSpec((2, 1, 4 * HP), c3),      # bih
        pl.BlockSpec((2, HP, 4 * HP), c3),     # whh
        pl.BlockSpec((2, 1, 4 * HP), c3),      # bhh
        pl.BlockSpec((2, HP, OP), c3),         # w2
        pl.BlockSpec((2, 1, OP), c3),          # b2
        pl.BlockSpec((GP, OP), c2),            # wg
    ]


def _weight_operands(packed):
    return (packed["w1"], packed["b1"], packed["wih"], packed["bih"],
            packed["whh"], packed["bhh"], packed["w2"], packed["b2"], packed["wg"])


def _vmem_limit_bytes(operands):
    # Sized from the actual operands (2x for default double-buffering) with slack for
    # outputs / scratch; clamped to 64 MiB so the same sizing also holds on v7x.
    b = sum(int(a.size) * a.dtype.itemsize for a in operands)
    return int(min(64 << 20, 2 * b + (16 << 20)))


def _cost_estimate(d: SCDims, steps: int = 1) -> pl.CostEstimate:
    NP, INP, HP, OP, GP = d.np_rows, d.in_pad, d.h_pad, d.out_pad, d.g_pad
    per_flops = 2 * 2 * NP * (INP * HP + 2 * HP * 4 * HP + HP * OP) + 2 * NP * GP * OP
    per_trans = 2 * NP * 5 * HP + NP * OP
    weight_bytes = 4 * (2 * (INP * HP + HP + 2 * (HP * 4 * HP + 4 * HP) + HP * OP + OP)
                        + GP * OP)
    per_io = 4 * (2 * NP * INP + NP * GP + 2 * NP * OP + 8 * NP * HP)
    return pl.CostEstimate(flops=int(steps * per_flops),
                           transcendentals=int(steps * per_trans),
                           bytes_accessed=int(weight_bytes + steps * per_io))


# ---------------------------------------------------------------------------
# Forward wrapper: one fused step (module semantics)
# ---------------------------------------------------------------------------
def sc_agent_forward(packed, inputs, goals_p, hidden_state, dims: SCDims):
    """One SCAgent step.  `inputs` = (x_lstm, x_dlstm) pre-packed via pack_step_inputs,
    `goals_p` padded goals, `hidden_state` as produced by sc_agent_init_hidden /
    pad_hidden_state / a previous call."""
    x_l, x_d = inputs
    (h_l, c_l), (tick, dh_all, dc_all) = hidden_state
    NP, INP, HP = dims.np_rows, dims.in_pad, dims.h_pad
    OP, GP, HZ = dims.out_pad, dims.g_pad, dims.horizon
    cdt = packed["w1"].dtype

    kernel = functools.partial(_sc_step_kernel, n_actions=dims.n_actions, compute_dtype=cdt)

    grid_spec = pltpu.PrefetchScalarGridSpec(
        num_scalar_prefetch=1,           # tick
        grid=(1,),
        in_specs=[
            pl.BlockSpec((NP, INP), lambda i, t: (0, 0)),            # x_lstm
            pl.BlockSpec((NP, INP), lambda i, t: (0, 0)),            # x_dlstm
            pl.BlockSpec((NP, GP), lambda i, t: (0, 0)),             # goals
            pl.BlockSpec((NP, HP), lambda i, t: (0, 0)),             # lstm h
            pl.BlockSpec((NP, HP), lambda i, t: (0, 0)),             # lstm c
            pl.BlockSpec((1, NP, HP), lambda i, t: (t[0], 0, 0)),    # dlstm h[tick] only
            pl.BlockSpec((1, NP, HP), lambda i, t: (t[0], 0, 0)),    # dlstm c[tick] only
            *_weight_specs(dims),
        ],
        out_specs=[
            pl.BlockSpec((NP, OP), lambda i, t: (0, 0)),             # probs (lane-dense)
            pl.BlockSpec((NP, OP), lambda i, t: (0, 0)),             # q_dlstm (lane-dense)
            pl.BlockSpec((NP, HP), lambda i, t: (0, 0)),             # lstm h_new
            pl.BlockSpec((NP, HP), lambda i, t: (0, 0)),             # lstm c_new
            pl.BlockSpec((1, NP, HP), lambda i, t: (t[0], 0, 0)),    # dh_all[tick] (aliased)
            pl.BlockSpec((1, NP, HP), lambda i, t: (t[0], 0, 0)),    # dc_all[tick] (aliased)
        ],
    )

    operands = (tick, x_l, x_d, goals_p, h_l, c_l, dh_all, dc_all, *_weight_operands(packed))

    probs_p, qd_p, h_new, c_new, dh_new, dc_new = pl.pallas_call(
        kernel,
        grid_spec=grid_spec,
        out_shape=(
            jax.ShapeDtypeStruct((NP, OP), jnp.float32),
            jax.ShapeDtypeStruct((NP, OP), jnp.float32),
            jax.ShapeDtypeStruct((NP, HP), jnp.float32),
            jax.ShapeDtypeStruct((NP, HP), jnp.float32),
            jax.ShapeDtypeStruct((HZ, NP, HP), jnp.float32),
            jax.ShapeDtypeStruct((HZ, NP, HP), jnp.float32),
        ),
        # Alias dh_all/dc_all onto outputs 4/5.  Operand indices count every positional arg
        # to pallas_call, including the scalar-prefetched `tick` (index 0), so dh_all is 6
        # and dc_all is 7.  Only the slot at `tick` is written; all other slots are
        # preserved in place.  Donate the state buffers under jit in production so the
        # update is truly in-place (no protective copy).
        input_output_aliases={6: 4, 7: 5},
        compiler_params=pltpu.CompilerParams(
            dimension_semantics=("arbitrary",),
            vmem_limit_bytes=_vmem_limit_bytes(operands)),
        cost_estimate=_cost_estimate(dims, steps=1),
    )(*operands)

    new_tick = (tick + 1) % dims.horizon
    probs = probs_p[:dims.n_rows, :dims.n_actions]
    q_dlstm = qd_p[:dims.n_rows, :dims.dlstm_out]
    return ((probs, q_dlstm), ((h_new, c_new), (new_tick, dh_new, dc_new)))


# ---------------------------------------------------------------------------
# Rollout wrapper: T fused steps in ONE pallas_call (weights stay VMEM-resident)
# ---------------------------------------------------------------------------
def sc_agent_rollout(packed, inputs_seq, goals_seq_p, hidden_state, dims: SCDims):
    """Run T SCAgent steps in a single kernel.  `inputs_seq` = (xs_lstm, xs_dlstm) with a
    leading time axis (see pack_rollout_inputs); the tick schedule is scalar-prefetched."""
    xs_l, xs_d = inputs_seq
    (h_l, c_l), (tick, dh_all, dc_all) = hidden_state
    T = xs_l.shape[0]
    NP, INP, HP = dims.np_rows, dims.in_pad, dims.h_pad
    OP, GP, HZ = dims.out_pad, dims.g_pad, dims.horizon
    cdt = packed["w1"].dtype

    ticks = ((tick[0] + jnp.arange(T, dtype=jnp.int32)) % dims.horizon).astype(jnp.int32)

    kernel = functools.partial(_sc_rollout_kernel, n_actions=dims.n_actions, compute_dtype=cdt)

    grid_spec = pltpu.PrefetchScalarGridSpec(
        num_scalar_prefetch=1,           # tick schedule (int32[T])
        grid=(T,),
        in_specs=[
            pl.BlockSpec((1, NP, INP), lambda i, t: (i, 0, 0)),      # xs_lstm[t]
            pl.BlockSpec((1, NP, INP), lambda i, t: (i, 0, 0)),      # xs_dlstm[t]
            pl.BlockSpec((1, NP, GP), lambda i, t: (i, 0, 0)),       # goals[t]
            pl.BlockSpec((NP, HP), lambda i, t: (0, 0)),             # h0
            pl.BlockSpec((NP, HP), lambda i, t: (0, 0)),             # c0
            pl.BlockSpec((HZ, NP, HP), lambda i, t: (0, 0, 0)),      # dh0 (all slots, once)
            pl.BlockSpec((HZ, NP, HP), lambda i, t: (0, 0, 0)),      # dc0 (all slots, once)
            *_weight_specs(dims),
        ],
        out_specs=[
            pl.BlockSpec((1, NP, OP), lambda i, t: (i, 0, 0)),       # probs[t]
            pl.BlockSpec((1, NP, OP), lambda i, t: (i, 0, 0)),       # q_dlstm[t]
            pl.BlockSpec((NP, HP), lambda i, t: (0, 0)),             # h_final
            pl.BlockSpec((NP, HP), lambda i, t: (0, 0)),             # c_final
            pl.BlockSpec((HZ, NP, HP), lambda i, t: (0, 0, 0)),      # dh_final
            pl.BlockSpec((HZ, NP, HP), lambda i, t: (0, 0, 0)),      # dc_final
        ],
        scratch_shapes=[
            pltpu.VMEM((NP, HP), jnp.float32),        # LSTM h carry
            pltpu.VMEM((NP, HP), jnp.float32),        # LSTM c carry
            pltpu.VMEM((HZ, NP, HP), jnp.float32),    # dilated h slots carry
            pltpu.VMEM((HZ, NP, HP), jnp.float32),    # dilated c slots carry
        ],
    )

    operands = (ticks, xs_l, xs_d, goals_seq_p, h_l, c_l, dh_all, dc_all,
                *_weight_operands(packed))

    probs_seq, qd_seq, h_T, c_T, dh_T, dc_T = pl.pallas_call(
        kernel,
        grid_spec=grid_spec,
        out_shape=(
            jax.ShapeDtypeStruct((T, NP, OP), jnp.float32),
            jax.ShapeDtypeStruct((T, NP, OP), jnp.float32),
            jax.ShapeDtypeStruct((NP, HP), jnp.float32),
            jax.ShapeDtypeStruct((NP, HP), jnp.float32),
            jax.ShapeDtypeStruct((HZ, NP, HP), jnp.float32),
            jax.ShapeDtypeStruct((HZ, NP, HP), jnp.float32),
        ),
        compiler_params=pltpu.CompilerParams(
            # Time axis is a sequential recurrence -> "arbitrary".  On v7x, a second
            # "parallel" row-tile axis over NP can split the batch across the 2 TCs when
            # NP is large; at small NP it is pure overhead, so it is omitted here.
            dimension_semantics=("arbitrary",),
            vmem_limit_bytes=_vmem_limit_bytes(operands)),
        cost_estimate=_cost_estimate(dims, steps=T),
    )(*operands)

    new_tick = (tick + T) % dims.horizon
    probs = probs_seq[:, :dims.n_rows, :dims.n_actions]
    q_dlstm = qd_seq[:, :dims.n_rows, :dims.dlstm_out]
    return ((probs, q_dlstm), ((h_T, c_T), (new_tick, dh_T, dc_T)))


# ---------------------------------------------------------------------------
# Parameter init (module-shaped), packing, input/state packing
# ---------------------------------------------------------------------------
def _uniform(key, shape, fan_in):
    bound = 1.0 / jnp.sqrt(jnp.float32(fan_in))
    return jax.random.uniform(key, shape, jnp.float32, -bound, bound)


def init_agent_params(key, in_dim, hidden_dim, out_dim):
    ks = jax.random.split(key, 8)
    return {
        "w1": _uniform(ks[0], (in_dim, hidden_dim), in_dim),
        "b1": _uniform(ks[1], (1, hidden_dim), in_dim),
        "wih": _uniform(ks[2], (hidden_dim, 4 * hidden_dim), hidden_dim),
        "bih": _uniform(ks[3], (1, 4 * hidden_dim), hidden_dim),
        "whh": _uniform(ks[4], (hidden_dim, 4 * hidden_dim), hidden_dim),
        "bhh": _uniform(ks[5], (1, 4 * hidden_dim), hidden_dim),
        "w2": _uniform(ks[6], (hidden_dim, out_dim), hidden_dim),
        "b2": _uniform(ks[7], (1, out_dim), hidden_dim),
    }


def init_sc_params(key, dims: SCDims):
    k1, k2, k3 = jax.random.split(key, 3)
    return {
        "lstm": init_agent_params(k1, dims.lstm_in, dims.lstm_hidden, dims.n_actions),
        "dlstm": init_agent_params(k2, dims.dlstm_in, dims.dlstm_hidden, dims.dlstm_out),
        "wg": _uniform(k3, (dims.latent, dims.n_actions), dims.latent),  # no bias
    }


def _pad2(x, rows, cols):
    r, c = x.shape
    return jnp.pad(x, ((0, rows - r), (0, cols - c)))


def _pad3(x, rows, cols):
    _, r, c = x.shape
    return jnp.pad(x, ((0, 0), (0, rows - r), (0, cols - c)))


def _pad_gate_cols(w, rows_pad, h_pad):
    """Pad a (rows, 4*H) [i,f,g,o]-packed matrix so gate k lands at lanes [k*h_pad, (k+1)*h_pad)."""
    r, c = w.shape
    h = c // 4
    blocks = [jnp.pad(w[:, k * h:(k + 1) * h], ((0, rows_pad - r), (0, h_pad - h)))
              for k in range(4)]
    return jnp.concatenate(blocks, axis=1)


def pack_sc_params(params, dims: SCDims, weight_dtype=jnp.bfloat16):
    """Zero-pad both branches to common (8,128)-aligned shapes and stack them on a leading
    branch axis (0 = LSTM, 1 = dilated LSTM).  Weight *matrices* (MXU operands) are stored in
    `weight_dtype` (bf16 by default: fast MXU path + halved weight HBM/VMEM); biases stay f32
    and all accumulation / gate math is f32 in-kernel."""
    INP, HP, OP, GP = dims.in_pad, dims.h_pad, dims.out_pad, dims.g_pad
    wd = weight_dtype

    def pack_branch(p):
        return {
            "w1": _pad2(p["w1"], INP, HP).astype(wd),
            "b1": _pad2(p["b1"], 1, HP),
            "wih": _pad_gate_cols(p["wih"], HP, HP).astype(wd),
            "bih": _pad_gate_cols(p["bih"], 1, HP),
            "whh": _pad_gate_cols(p["whh"], HP, HP).astype(wd),
            "bhh": _pad_gate_cols(p["bhh"], 1, HP),
            "w2": _pad2(p["w2"], HP, OP).astype(wd),
            "b2": _pad2(p["b2"], 1, OP),
        }

    lstm_p = pack_branch(params["lstm"])
    dlstm_p = pack_branch(params["dlstm"])
    packed = {k: jnp.stack([lstm_p[k], dlstm_p[k]], axis=0) for k in lstm_p}
    packed["wg"] = _pad2(params["wg"], GP, OP).astype(wd)
    return packed


def pack_step_inputs(lstm_x, dlstm_x, goals, dims: SCDims):
    NP, INP, GP = dims.np_rows, dims.in_pad, dims.g_pad
    return _pad2(lstm_x, NP, INP), _pad2(dlstm_x, NP, INP), _pad2(goals, NP, GP)


def pack_rollout_inputs(lstm_xs, dlstm_xs, goals_seq, dims: SCDims):
    """Pad once per rollout (amortized), not per step."""
    NP, INP, GP = dims.np_rows, dims.in_pad, dims.g_pad
    return _pad3(lstm_xs, NP, INP), _pad3(dlstm_xs, NP, INP), _pad3(goals_seq, NP, GP)


def pad_hidden_state(h, c, tick, dh_slots, dc_slots, dims: SCDims):
    NP, HP = dims.np_rows, dims.h_pad
    return ((_pad2(h, NP, HP), _pad2(c, NP, HP)),
            (jnp.asarray([tick], jnp.int32), _pad3(dh_slots, NP, HP), _pad3(dc_slots, NP, HP)))


def sc_agent_init_hidden(dims: SCDims):
    NP, HP, HZ = dims.np_rows, dims.h_pad, dims.horizon
    lstm_state = (jnp.zeros((NP, HP), jnp.float32), jnp.zeros((NP, HP), jnp.float32))
    dlstm_state = (jnp.zeros((1,), jnp.int32),
                   jnp.zeros((HZ, NP, HP), jnp.float32),
                   jnp.zeros((HZ, NP, HP), jnp.float32))
    return lstm_state, dlstm_state


# ---------------------------------------------------------------------------
# Pure-JAX reference (unpadded) for correctness checks
# ---------------------------------------------------------------------------
def _ref_agent_step(x, h, c, p):
    z = jnp.maximum(x @ p["w1"] + p["b1"], 0.0)
    H = h.shape[1]
    gates = z @ p["wih"] + p["bih"] + h @ p["whh"] + p["bhh"]
    i = jax.nn.sigmoid(gates[:, :H])
    f = jax.nn.sigmoid(gates[:, H:2 * H])
    g = jnp.tanh(gates[:, 2 * H:3 * H])
    o = jax.nn.sigmoid(gates[:, 3 * H:])
    c_new = f * c + i * g
    h_new = o * jnp.tanh(c_new)
    return h_new @ p["w2"] + p["b2"], h_new, c_new


def _ref_sc_step(params, lstm_x, dlstm_x, goals, h, c, dh_slots, dc_slots, tick, horizon):
    q_l, h_n, c_n = _ref_agent_step(lstm_x, h, c, params["lstm"])
    q_d, dh_n, dc_n = _ref_agent_step(dlstm_x, dh_slots[tick], dc_slots[tick], params["dlstm"])
    dh_slots = dh_slots.at[tick].set(dh_n)
    dc_slots = dc_slots.at[tick].set(dc_n)
    probs = jax.nn.softmax((goals @ params["wg"]) * q_l, axis=-1)
    return probs, q_d, h_n, c_n, dh_slots, dc_slots, (tick + 1) % horizon


# ---------------------------------------------------------------------------
if __name__ == "__main__":
    batch_size = 2
    n_agents = 2
    lstm_input_shape = 16
    dlstm_input_shape = 20
    lstm_hidden_dim = 32
    dilated_lstm_hidden_dim = 32
    n_actions = 8                       # == lstm_output_shape
    latent_state_dim = 12
    dlstm_output_shape = latent_state_dim
    horizon = 3
    T = 4                               # rollout length for the time-fused kernel

    dims = make_dims(batch_size, n_agents, lstm_input_shape, dlstm_input_shape,
                     lstm_hidden_dim, dilated_lstm_hidden_dim,
                     n_actions, dlstm_output_shape, latent_state_dim, horizon)
    N, HL, HD = dims.n_rows, dims.lstm_hidden, dims.dlstm_hidden

    key = jax.random.PRNGKey(0)
    kp, kx1, kx2, kg, kh, kc, kdh, kdc = jax.random.split(key, 8)

    params = init_sc_params(kp, dims)

    lstm_xs = jax.random.normal(kx1, (T, N, lstm_input_shape), jnp.float32)
    dlstm_xs = jax.random.normal(kx2, (T, N, dlstm_input_shape), jnp.float32)
    goals_seq = jax.random.normal(kg, (T, N, latent_state_dim), jnp.float32)

    h0 = 0.3 * jax.random.normal(kh, (N, lstm_hidden_dim), jnp.float32)
    c0 = 0.3 * jax.random.normal(kc, (N, lstm_hidden_dim), jnp.float32)
    dh0 = 0.3 * jax.random.normal(kdh, (horizon, N, dilated_lstm_hidden_dim), jnp.float32)
    dc0 = 0.3 * jax.random.normal(kdc, (horizon, N, dilated_lstm_hidden_dim), jnp.float32)
    tick0 = 1

    hidden = pad_hidden_state(h0, c0, tick0, dh0, dc0, dims)
    (_, _), (_, dh_all_p, dc_all_p) = hidden

    # ---- pure-JAX reference: one step, then a T-step rollout ----
    r_probs0, r_qd0, r_h0, r_c0, r_dh0, r_dc0, _ = _ref_sc_step(
        params, lstm_xs[0], dlstm_xs[0], goals_seq[0], h0, c0, dh0, dc0, tick0, horizon)

    ref_probs, ref_qd = [], []
    rh, rc, rdh, rdc, rt = h0, c0, dh0, dc0, tick0
    for t in range(T):
        p_t, q_t, rh, rc, rdh, rdc, rt = _ref_sc_step(
            params, lstm_xs[t], dlstm_xs[t], goals_seq[t], rh, rc, rdh, rdc, rt, horizon)
        ref_probs.append(p_t)
        ref_qd.append(q_t)
    ref_probs = jnp.stack(ref_probs)
    ref_qd = jnp.stack(ref_qd)

    x_l0, x_d0, goals0 = pack_step_inputs(lstm_xs[0], dlstm_xs[0], goals_seq[0], dims)
    xs_l, xs_d, goals_p = pack_rollout_inputs(lstm_xs, dlstm_xs, goals_seq, dims)

    # f32 path: tight tolerances.  bf16 path (recommended prod config on v5e/v6e): loose.
    for weight_dtype, tol in ((jnp.float32, 1e-5), (jnp.bfloat16, 5e-2)):
        packed = pack_sc_params(params, dims, weight_dtype)

        # ---------- single fused step (module-faithful forward) ----------
        (probs, q_d), ((h1, c1), (tick1, dh1, dc1)) = sc_agent_forward(
            packed, (x_l0, x_d0), goals0, hidden, dims)
        jax.block_until_ready((probs, q_d, h1, c1, tick1, dh1, dc1))

        assert bool(jnp.allclose(probs, r_probs0, atol=tol, rtol=tol))
        assert bool(jnp.allclose(q_d, r_qd0, atol=tol, rtol=tol))
        assert bool(jnp.allclose(h1[:N, :HL], r_h0, atol=tol, rtol=tol))
        assert bool(jnp.allclose(c1[:N, :HL], r_c0, atol=tol, rtol=tol))
        assert bool(jnp.allclose(dh1[tick0, :N, :HD], r_dh0[tick0], atol=tol, rtol=tol))
        assert bool(jnp.allclose(dc1[tick0, :N, :HD], r_dc0[tick0], atol=tol, rtol=tol))
        # Exact softmax normalization -> rows sum to 1.
        assert float(jnp.max(jnp.abs(jnp.sum(probs, axis=-1) - 1.0))) < 1e-5
        # Only the `tick` slot was written in-kernel; every other dilated slot must be
        # preserved bit-exactly through the aliased outputs.
        for s in range(horizon):
            if s != tick0:
                assert bool(jnp.array_equal(dh1[s], dh_all_p[s]))
                assert bool(jnp.array_equal(dc1[s], dc_all_p[s]))
        assert int(tick1[0]) == (tick0 + 1) % horizon
        if weight_dtype == jnp.float32:
            # Zero padding is self-consistent: padded hidden lanes stay exactly zero.
            assert bool(jnp.all(h1[:, lstm_hidden_dim:] == 0.0))

        # ---------- T-step rollout: one pallas_call, weights VMEM-resident ----------
        (probs_seq, qd_seq), ((hT, cT), (tickT, dhT, dcT)) = sc_agent_rollout(
            packed, (xs_l, xs_d), goals_p, hidden, dims)
        jax.block_until_ready((probs_seq, qd_seq, hT, cT, tickT, dhT, dcT))

        rtol_roll = tol if weight_dtype == jnp.bfloat16 else 2e-4
        assert bool(jnp.allclose(probs_seq, ref_probs, atol=rtol_roll, rtol=rtol_roll))
        assert bool(jnp.allclose(qd_seq, ref_qd, atol=rtol_roll, rtol=rtol_roll))
        assert bool(jnp.allclose(hT[:N, :HL], rh, atol=rtol_roll, rtol=rtol_roll))
        assert bool(jnp.allclose(cT[:N, :HL], rc, atol=rtol_roll, rtol=rtol_roll))
        assert bool(jnp.allclose(dhT[:, :N, :HD], rdh, atol=rtol_roll, rtol=rtol_roll))
        assert bool(jnp.allclose(dcT[:, :N, :HD], rdc, atol=rtol_roll, rtol=rtol_roll))
        assert int(tickT[0]) == (tick0 + T) % horizon

    print("KERNEL_OK")
</pallas_src>

<mosaic_0001>
module attributes {stable_mosaic.version = 11 : i64} {
  func.func @_sc_step_kernel(%arg0: i32, %arg1: memref<1xi32, #tpu.memory_space<smem>>, %arg2: memref<8x128xf32, #tpu.memory_space<vmem>>, %arg3: memref<8x128xf32, #tpu.memory_space<vmem>>, %arg4: memref<8x128xf32, #tpu.memory_space<vmem>>, %arg5: memref<8x128xf32, #tpu.memory_space<vmem>>, %arg6: memref<8x128xf32, #tpu.memory_space<vmem>>, %arg7: memref<1x8x128xf32, #tpu.memory_space<vmem>>, %arg8: memref<1x8x128xf32, #tpu.memory_space<vmem>>, %arg9: memref<2x128x128xf32, #tpu.memory_space<vmem>>, %arg10: memref<2x1x128xf32, #tpu.memory_space<vmem>>, %arg11: memref<2x128x512xf32, #tpu.memory_space<vmem>>, %arg12: memref<2x1x512xf32, #tpu.memory_space<vmem>>, %arg13: memref<2x128x512xf32, #tpu.memory_space<vmem>>, %arg14: memref<2x1x512xf32, #tpu.memory_space<vmem>>, %arg15: memref<2x128x128xf32, #tpu.memory_space<vmem>>, %arg16: memref<2x1x128xf32, #tpu.memory_space<vmem>>, %arg17: memref<128x128xf32, #tpu.memory_space<vmem>>, %arg18: memref<8x128xf32, #tpu.memory_space<vmem>>, %arg19: memref<8x128xf32, #tpu.memory_space<vmem>>, %arg20: memref<8x128xf32, #tpu.memory_space<vmem>>, %arg21: memref<8x128xf32, #tpu.memory_space<vmem>>, %arg22: memref<1x8x128xf32, #tpu.memory_space<vmem>>, %arg23: memref<1x8x128xf32, #tpu.memory_space<vmem>>) attributes {dimension_semantics = [#tpu.dimension_semantics<arbitrary>], iteration_bounds = array<i64: 1>, scalar_prefetch = 1 : i64, scratch_operands = 0 : i64, tpu.core_type = #tpu.core_type<tc>, window_params = [{pipeline_mode = #tpu.pipeline_mode<synchronous>, transform_indices = @transform_0, window_bounds = array<i64: 8, 128>}, {pipeline_mode = #tpu.pipeline_mode<synchronous>, transform_indices = @transform_1, window_bounds = array<i64: 8, 128>}, {pipeline_mode = #tpu.pipeline_mode<synchronous>, transform_indices = @transform_2, window_bounds = array<i64: 8, 128>}, {pipeline_mode = #tpu.pipeline_mode<synchronous>, transform_indices = @transform_3, window_bounds = array<i64: 8, 128>}, {pipeline_mode = #tpu.pipeline_mode<synchronous>, transform_indices = @transform_4, window_bounds = array<i64: 8, 128>}, {transform_indices = @transform_5, window_bounds = array<i64: 1, 8, 128>}, {transform_indices = @transform_6, window_bounds = array<i64: 1, 8, 128>}, {pipeline_mode = #tpu.pipeline_mode<synchronous>, transform_indices = @transform_7, window_bounds = array<i64: 2, 128, 128>}, {pipeline_mode = #tpu.pipeline_mode<synchronous>, transform_indices = @transform_8, window_bounds = array<i64: 2, 1, 128>}, {pipeline_mode = #tpu.pipeline_mode<synchronous>, transform_indices = @transform_9, window_bounds = array<i64: 2, 128, 512>}, {pipeline_mode = #tpu.pipeline_mode<synchronous>, transform_indices = @transform_10, window_bounds = array<i64: 2, 1, 512>}, {pipeline_mode = #tpu.pipeline_mode<synchronous>, transform_indices = @transform_11, window_bounds = array<i64: 2, 128, 512>}, {pipeline_mode = #tpu.pipeline_mode<synchronous>, transform_indices = @transform_12, window_bounds = array<i64: 2, 1, 512>}, {pipeline_mode = #tpu.pipeline_mode<synchronous>, transform_indices = @transform_13, window_bounds = array<i64: 2, 128, 128>}, {pipeline_mode = #tpu.pipeline_mode<synchronous>, transform_indices = @transform_14, window_bounds = array<i64: 2, 1, 128>}, {pipeline_mode = #tpu.pipeline_mode<synchronous>, transform_indices = @transform_15, window_bounds = array<i64: 128, 128>}, {pipeline_mode = #tpu.pipeline_mode<synchronous>, transform_indices = @transform_16, window_bounds = array<i64: 8, 128>}, {pipeline_mode = #tpu.pipeline_mode<synchronous>, transform_indices = @transform_17, window_bounds = array<i64: 8, 128>}, {pipeline_mode = #tpu.pipeline_mode<synchronous>, transform_indices = @transform_18, window_bounds = array<i64: 8, 128>}, {pipeline_mode = #tpu.pipeline_mode<synchronous>, transform_indices = @transform_19, window_bounds = array<i64: 8, 128>}, {transform_indices = @transform_20, window_bounds = array<i64: 1, 8, 128>}, {transform_indices = @transform_21, window_bounds = array<i64: 1, 8, 128>}]} {
    %c0 = arith.constant 0 : index
    %c0_0 = arith.constant 0 : index
    %0 = vector.load %arg2[%c0, %c0_0] : memref<8x128xf32, #tpu.memory_space<vmem>>, vector<8x128xf32>
    %c0_1 = arith.constant 0 : index
    %c0_2 = arith.constant 0 : index
    %1 = vector.load %arg5[%c0_1, %c0_2] : memref<8x128xf32, #tpu.memory_space<vmem>>, vector<8x128xf32>
    %c0_3 = arith.constant 0 : index
    %c0_4 = arith.constant 0 : index
    %2 = vector.load %arg6[%c0_3, %c0_4] : memref<8x128xf32, #tpu.memory_space<vmem>>, vector<8x128xf32>
    %c0_5 = arith.constant 0 : index
    %c0_6 = arith.constant 0 : index
    %c0_7 = arith.constant 0 : index
    %3 = vector.load %arg9[%c0_5, %c0_6, %c0_7] : memref<2x128x128xf32, #tpu.memory_space<vmem>>, vector<1x128x128xf32>
    %4 = vector.shape_cast %3 : vector<1x128x128xf32> to vector<128x128xf32>
    %c0_8 = arith.constant 0 : index
    %c0_9 = arith.constant 0 : index
    %c0_10 = arith.constant 0 : index
    %5 = vector.load %arg10[%c0_8, %c0_9, %c0_10] : memref<2x1x128xf32, #tpu.memory_space<vmem>>, vector<1x1x128xf32>
    %6 = vector.shape_cast %5 : vector<1x1x128xf32> to vector<1x128xf32>
    %c0_11 = arith.constant 0 : index
    %c0_12 = arith.constant 0 : index
    %c0_13 = arith.constant 0 : index
    %7 = vector.load %arg11[%c0_11, %c0_12, %c0_13] : memref<2x128x512xf32, #tpu.memory_space<vmem>>, vector<1x128x512xf32>
    %8 = vector.shape_cast %7 : vector<1x128x512xf32> to vector<128x512xf32>
    %c0_14 = arith.constant 0 : index
    %c0_15 = arith.constant 0 : index
    %c0_16 = arith.constant 0 : index
    %9 = vector.load %arg12[%c0_14, %c0_15, %c0_16] : memref<2x1x512xf32, #tpu.memory_space<vmem>>, vector<1x1x512xf32>
    %10 = vector.shape_cast %9 : vector<1x1x512xf32> to vector<1x512xf32>
    %c0_17 = arith.constant 0 : index
    %c0_18 = arith.constant 0 : index
    %c0_19 = arith.constant 0 : index
    %11 = vector.load %arg13[%c0_17, %c0_18, %c0_19] : memref<2x128x512xf32, #tpu.memory_space<vmem>>, vector<1x128x512xf32>
    %12 = vector.shape_cast %11 : vector<1x128x512xf32> to vector<128x512xf32>
    %c0_20 = arith.constant 0 : index
    %c0_21 = arith.constant 0 : index
    %c0_22 = arith.constant 0 : index
    %13 = vector.load %arg14[%c0_20, %c0_21, %c0_22] : memref<2x1x512xf32, #tpu.memory_space<vmem>>, vector<1x1x512xf32>
    %14 = vector.shape_cast %13 : vector<1x1x512xf32> to vector<1x512xf32>
    %c0_23 = arith.constant 0 : index
    %c0_24 = arith.constant 0 : index
    %c0_25 = arith.constant 0 : index
    %15 = vector.load %arg15[%c0_23, %c0_24, %c0_25] : memref<2x128x128xf32, #tpu.memory_space<vmem>>, vector<1x128x128xf32>
    %16 = vector.shape_cast %15 : vector<1x128x128xf32> to vector<128x128xf32>
    %c0_26 = arith.constant 0 : index
    %c0_27 = arith.constant 0 : index
    %c0_28 = arith.constant 0 : index
    %17 = vector.load %arg16[%c0_26, %c0_27, %c0_28] : memref<2x1x128xf32, #tpu.memory_space<vmem>>, vector<1x1x128xf32>
    %18 = vector.shape_cast %17 : vector<1x1x128xf32> to vector<1x128xf32>
    %cst = arith.constant dense<0.000000e+00> : vector<8x128xf32>
    %19 = tpu.matmul %0, %4, %cst {dimension_numbers = #tpu.dot_dimension_numbers<[1], [0], [0], [1], [0, 0, 1, 1], [], []>} : vector<8x128xf32>, vector<128x128xf32>, vector<8x128xf32> -> vector<8x128xf32>
    %20 = vector.broadcast %6 : vector<1x128xf32> to vector<8x128xf32>
    %21 = arith.addf %19, %20 : vector<8x128xf32>
    %cst_29 = arith.constant 0.000000e+00 : f32
    %22 = vector.broadcast %cst_29 : f32 to vector<8x128xf32>
    %23 = arith.maximumf %21, %22 : vector<8x128xf32>
    %cst_30 = arith.constant dense<0.000000e+00> : vector<8x512xf32>
    %24 = tpu.matmul %23, %8, %cst_30 {dimension_numbers = #tpu.dot_dimension_numbers<[1], [0], [0], [1], [0, 0, 1, 1], [], []>} : vector<8x128xf32>, vector<128x512xf32>, vector<8x512xf32> -> vector<8x512xf32>
    %25 = vector.broadcast %10 : vector<1x512xf32> to vector<8x512xf32>
    %26 = arith.addf %24, %25 : vector<8x512xf32>
    %cst_31 = arith.constant dense<0.000000e+00> : vector<8x512xf32>
    %27 = tpu.matmul %1, %12, %cst_31 {dimension_numbers = #tpu.dot_dimension_numbers<[1], [0], [0], [1], [0, 0, 1, 1], [], []>} : vector<8x128xf32>, vector<128x512xf32>, vector<8x512xf32> -> vector<8x512xf32>
    %28 = arith.addf %26, %27 : vector<8x512xf32>
    %29 = vector.broadcast %14 : vector<1x512xf32> to vector<8x512xf32>
    %30 = arith.addf %28, %29 : vector<8x512xf32>
    %31 = vector.extract_strided_slice %30 {offsets = [0, 0], sizes = [8, 128], strides = [1, 1]} : vector<8x512xf32> to vector<8x128xf32>
    %32 = arith.negf %31 : vector<8x128xf32>
    %33 = math.exp %32 : vector<8x128xf32>
    %cst_32 = arith.constant 1.000000e+00 : f32
    %34 = vector.broadcast %cst_32 : f32 to vector<8x128xf32>
    %35 = arith.addf %34, %33 : vector<8x128xf32>
    %36 = arith.divf %34, %35 : vector<8x128xf32>
    %37 = vector.extract_strided_slice %30 {offsets = [0, 128], sizes = [8, 128], strides = [1, 1]} : vector<8x512xf32> to vector<8x128xf32>
    %38 = arith.negf %37 : vector<8x128xf32>
    %39 = math.exp %38 : vector<8x128xf32>
    %cst_33 = arith.constant 1.000000e+00 : f32
    %40 = vector.broadcast %cst_33 : f32 to vector<8x128xf32>
    %41 = arith.addf %40, %39 : vector<8x128xf32>
    %42 = arith.divf %40, %41 : vector<8x128xf32>
    %43 = vector.extract_strided_slice %30 {offsets = [0, 256], sizes = [8, 128], strides = [1, 1]} : vector<8x512xf32> to vector<8x128xf32>
    %44 = math.tanh %43 : vector<8x128xf32>
    %45 = vector.extract_strided_slice %30 {offsets = [0, 384], sizes = [8, 128], strides = [1, 1]} : vector<8x512xf32> to vector<8x128xf32>
    %46 = arith.negf %45 : vector<8x128xf32>
    %47 = math.exp %46 : vector<8x128xf32>
    %cst_34 = arith.constant 1.000000e+00 : f32
    %48 = vector.broadcast %cst_34 : f32 to vector<8x128xf32>
    %49 = arith.addf %48, %47 : vector<8x128xf32>
    %50 = arith.divf %48, %49 : vector<8x128xf32>
    %51 = arith.mulf %42, %2 : vector<8x128xf32>
    %52 = arith.mulf %36, %44 : vector<8x128xf32>
    %53 = arith.addf %51, %52 : vector<8x128xf32>
    %54 = math.tanh %53 : vector<8x128xf32>
    %55 = arith.mulf %50, %54 : vector<8x128xf32>
    %cst_35 = arith.constant dense<0.000000e+00> : vector<8x128xf32>
    %56 = tpu.matmul %55, %16, %cst_35 {dimension_numbers = #tpu.dot_dimension_numbers<[1], [0], [0], [1], [0, 0, 1, 1], [], []>} : vector<8x128xf32>, vector<128x128xf32>, vector<8x128xf32> -> vector<8x128xf32>
    %57 = vector.broadcast %18 : vector<1x128xf32> to vector<8x128xf32>
    %58 = arith.addf %56, %57 : vector<8x128xf32>
    %c0_36 = arith.constant 0 : index
    %c0_37 = arith.constant 0 : index
    %59 = vector.load %arg3[%c0_36, %c0_37] : memref<8x128xf32, #tpu.memory_space<vmem>>, vector<8x128xf32>
    %c0_38 = arith.constant 0 : index
    %c0_39 = arith.constant 0 : index
    %c0_40 = arith.constant 0 : index
    %60 = vector.load %arg7[%c0_38, %c0_39, %c0_40] : memref<1x8x128xf32, #tpu.memory_space<vmem>>, vector<1x8x128xf32>
    %61 = vector.shape_cast %60 : vector<1x8x128xf32> to vector<8x128xf32>
    %c0_41 = arith.constant 0 : index
    %c0_42 = arith.constant 0 : index
    %c0_43 = arith.constant 0 : index
    %62 = vector.load %arg8[%c0_41, %c0_42, %c0_43] : memref<1x8x128xf32, #tpu.memory_space<vmem>>, vector<1x8x128xf32>
    %63 = vector.shape_cast %62 : vector<1x8x128xf32> to vector<8x128xf32>
    %c1 = arith.constant 1 : index
    %c0_44 = arith.constant 0 : index
    %c0_45 = arith.constant 0 : index
    %64 = vector.load %arg9[%c1, %c0_44, %c0_45] : memref<2x128x128xf32, #tpu.memory_space<vmem>>, vector<1x128x128xf32>
    %65 = vector.shape_cast %64 : vector<1x128x128xf32> to vector<128x128xf32>
    %c1_46 = arith.constant 1 : index
    %c0_47 = arith.constant 0 : index
    %c0_48 = arith.constant 0 : index
    %66 = vector.load %arg10[%c1_46, %c0_47, %c0_48] : memref<2x1x128xf32, #tpu.memory_space<vmem>>, vector<1x1x128xf32>
    %67 = vector.shape_cast %66 : vector<1x1x128xf32> to vector<1x128xf32>
    %c1_49 = arith.constant 1 : index
    %c0_50 = arith.constant 0 : index
    %c0_51 = arith.constant 0 : index
    %68 = vector.load %arg11[%c1_49, %c0_50, %c0_51] : memref<2x128x512xf32, #tpu.memory_space<vmem>>, vector<1x128x512xf32>
    %69 = vector.shape_cast %68 : vector<1x128x512xf32> to vector<128x512xf32>
    %c1_52 = arith.constant 1 : index
    %c0_53 = arith.constant 0 : index
    %c0_54 = arith.constant 0 : index
    %70 = vector.load %arg12[%c1_52, %c0_53, %c0_54] : memref<2x1x512xf32, #tpu.memory_space<vmem>>, vector<1x1x512xf32>
    %71 = vector.shape_cast %70 : vector<1x1x512xf32> to vector<1x512xf32>
    %c1_55 = arith.constant 1 : index
    %c0_56 = arith.constant 0 : index
    %c0_57 = arith.constant 0 : index
    %72 = vector.load %arg13[%c1_55, %c0_56, %c0_57] : memref<2x128x512xf32, #tpu.memory_space<vmem>>, vector<1x128x512xf32>
    %73 = vector.shape_cast %72 : vector<1x128x512xf32> to vector<128x512xf32>
    %c1_58 = arith.constant 1 : index
    %c0_59 = arith.constant 0 : index
    %c0_60 = arith.constant 0 : index
    %74 = vector.load %arg14[%c1_58, %c0_59, %c0_60] : memref<2x1x512xf32, #tpu.memory_space<vmem>>, vector<1x1x512xf32>
    %75 = vector.shape_cast %74 : vector<1x1x512xf32> to vector<1x512xf32>
    %c1_61 = arith.constant 1 : index
    %c0_62 = arith.constant 0 : index
    %c0_63 = arith.constant 0 : index
    %76 = vector.load %arg15[%c1_61, %c0_62, %c0_63] : memref<2x128x128xf32, #tpu.memory_space<vmem>>, vector<1x128x128xf32>
    %77 = vector.shape_cast %76 : vector<1x128x128xf32> to vector<128x128xf32>
    %c1_64 = arith.constant 1 : index
    %c0_65 = arith.constant 0 : index
    %c0_66 = arith.constant 0 : index
    %78 = vector.load %arg16[%c1_64, %c0_65, %c0_66] : memref<2x1x128xf32, #tpu.memory_space<vmem>>, vector<1x1x128xf32>
    %79 = vector.shape_cast %78 : vector<1x1x128xf32> to vector<1x128xf32>
    %cst_67 = arith.constant dense<0.000000e+00> : vector<8x128xf32>
    %80 = tpu.matmul %59, %65, %cst_67 {dimension_numbers = #tpu.dot_dimension_numbers<[1], [0], [0], [1], [0, 0, 1, 1], [], []>} : vector<8x128xf32>, vector<128x128xf32>, vector<8x128xf32> -> vector<8x128xf32>
    %81 = vector.broadcast %67 : vector<1x128xf32> to vector<8x128xf32>
    %82 = arith.addf %80, %81 : vector<8x128xf32>
    %cst_68 = arith.constant 0.000000e+00 : f32
    %83 = vector.broadcast %cst_68 : f32 to vector<8x128xf32>
    %84 = arith.maximumf %82, %83 : vector<8x128xf32>
    %cst_69 = arith.constant dense<0.000000e+00> : vector<8x512xf32>
    %85 = tpu.matmul %84, %69, %cst_69 {dimension_numbers = #tpu.dot_dimension_numbers<[1], [0], [0], [1], [0, 0, 1, 1], [], []>} : vector<8x128xf32>, vector<128x512xf32>, vector<8x512xf32> -> vector<8x512xf32>
    %86 = vector.broadcast %71 : vector<1x512xf32> to vector<8x512xf32>
    %87 = arith.addf %85, %86 : vector<8x512xf32>
    %cst_70 = arith.constant dense<0.000000e+00> : vector<8x512xf32>
    %88 = tpu.matmul %61, %73, %cst_70 {dimension_numbers = #tpu.dot_dimension_numbers<[1], [0], [0], [1], [0, 0, 1, 1], [], []>} : vector<8x128xf32>, vector<128x512xf32>, vector<8x512xf32> -> vector<8x512xf32>
    %89 = arith.addf %87, %88 : vector<8x512xf32>
    %90 = vector.broadcast %75 : vector<1x512xf32> to vector<8x512xf32>
    %91 = arith.addf %89, %90 : vector<8x512xf32>
    %92 = vector.extract_strided_slice %91 {offsets = [0, 0], sizes = [8, 128], strides = [1, 1]} : vector<8x512xf32> to vector<8x128xf32>
    %93 = arith.negf %92 : vector<8x128xf32>
    %94 = math.exp %93 : vector<8x128xf32>
    %cst_71 = arith.constant 1.000000e+00 : f32
    %95 = vector.broadcast %cst_71 : f32 to vector<8x128xf32>
    %96 = arith.addf %95, %94 : vector<8x128xf32>
    %97 = arith.divf %95, %96 : vector<8x128xf32>
    %98 = vector.extract_strided_slice %91 {offsets = [0, 128], sizes = [8, 128], strides = [1, 1]} : vector<8x512xf32> to vector<8x128xf32>
    %99 = arith.negf %98 : vector<8x128xf32>
    %100 = math.exp %99 : vector<8x128xf32>
    %cst_72 = arith.constant 1.000000e+00 : f32
    %101 = vector.broadcast %cst_72 : f32 to vector<8x128xf32>
    %102 = arith.addf %101, %100 : vector<8x128xf32>
    %103 = arith.divf %101, %102 : vector<8x128xf32>
    %104 = vector.extract_strided_slice %91 {offsets = [0, 256], sizes = [8, 128], strides = [1, 1]} : vector<8x512xf32> to vector<8x128xf32>
    %105 = math.tanh %104 : vector<8x128xf32>
    %106 = vector.extract_strided_slice %91 {offsets = [0, 384], sizes = [8, 128], strides = [1, 1]} : vector<8x512xf32> to vector<8x128xf32>
    %107 = arith.negf %106 : vector<8x128xf32>
    %108 = math.exp %107 : vector<8x128xf32>
    %cst_73 = arith.constant 1.000000e+00 : f32
    %109 = vector.broadcast %cst_73 : f32 to vector<8x128xf32>
    %110 = arith.addf %109, %108 : vector<8x128xf32>
    %111 = arith.divf %109, %110 : vector<8x128xf32>
    %112 = arith.mulf %103, %63 : vector<8x128xf32>
    %113 = arith.mulf %97, %105 : vector<8x128xf32>
    %114 = arith.addf %112, %113 : vector<8x128xf32>
    %115 = math.tanh %114 : vector<8x128xf32>
    %116 = arith.mulf %111, %115 : vector<8x128xf32>
    %cst_74 = arith.constant dense<0.000000e+00> : vector<8x128xf32>
    %117 = tpu.matmul %116, %77, %cst_74 {dimension_numbers = #tpu.dot_dimension_numbers<[1], [0], [0], [1], [0, 0, 1, 1], [], []>} : vector<8x128xf32>, vector<128x128xf32>, vector<8x128xf32> -> vector<8x128xf32>
    %118 = vector.broadcast %79 : vector<1x128xf32> to vector<8x128xf32>
    %119 = arith.addf %117, %118 : vector<8x128xf32>
    %c0_75 = arith.constant 0 : index
    %c0_76 = arith.constant 0 : index
    %120 = vector.load %arg4[%c0_75, %c0_76] : memref<8x128xf32, #tpu.memory_space<vmem>>, vector<8x128xf32>
    %c0_77 = arith.constant 0 : index
    %c0_78 = arith.constant 0 : index
    %121 = vector.load %arg17[%c0_77, %c0_78] : memref<128x128xf32, #tpu.memory_space<vmem>>, vector<128x128xf32>
    %cst_79 = arith.constant dense<0.000000e+00> : vector<8x128xf32>
    %122 = tpu.matmul %120, %121, %cst_79 {dimension_numbers = #tpu.dot_dimension_numbers<[1], [0], [0], [1], [0, 0, 1, 1], [], []>} : vector<8x128xf32>, vector<128x128xf32>, vector<8x128xf32> -> vector<8x128xf32>
    %123 = arith.mulf %122, %58 : vector<8x128xf32>
    %124 = tpu.iota {dimensions = array<i32: 1>} : vector<8x128xi32>
    %c8_i32 = arith.constant 8 : i32
    %125 = vector.broadcast %c8_i32 : i32 to vector<8x128xi32>
    %126 = arith.cmpi slt, %124, %125 : vector<8x128xi32>
    %cst_80 = arith.constant -1.000000e+30 : f32
    %127 = vector.broadcast %cst_80 : f32 to vector<8x128xf32>
    %128 = arith.select %126, %123, %127 : vector<8x128xi1>, vector<8x128xf32>
    %cst_81 = arith.constant dense<0xFF800000> : vector<8xf32>
    %129 = vector.multi_reduction <maximumf>, %128, %cst_81 [1] : vector<8x128xf32> to vector<8xf32>
    %130 = vector.shape_cast %129 : vector<8xf32> to vector<8x1xf32>
    %131 = vector.broadcast %130 : vector<8x1xf32> to vector<8x128xf32>
    %132 = arith.subf %128, %131 : vector<8x128xf32>
    %133 = math.exp %132 : vector<8x128xf32>
    %cst_82 = arith.constant dense<0.000000e+00> : vector<8xf32>
    %134 = vector.multi_reduction <add>, %133, %cst_82 [1] : vector<8x128xf32> to vector<8xf32>
    %135 = vector.shape_cast %134 : vector<8xf32> to vector<8x1xf32>
    %136 = vector.broadcast %135 : vector<8x1xf32> to vector<8x128xf32>
    %137 = arith.divf %133, %136 : vector<8x128xf32>
    %c0_83 = arith.constant 0 : index
    %c0_84 = arith.constant 0 : index
    %138 = vector.load %arg18[%c0_83, %c0_84] : memref<8x128xf32, #tpu.memory_space<vmem>>, vector<8x128xf32>
    tpu.vector_store %arg18[%c0_83, %c0_84], %137 {strides = array<i32>} : memref<8x128xf32, #tpu.memory_space<vmem>>, vector<8x128xf32>,
    %c0_85 = arith.constant 0 : index
    %c0_86 = arith.constant 0 : index
    %139 = vector.load %arg19[%c0_85, %c0_86] : memref<8x128xf32, #tpu.memory_space<vmem>>, vector<8x128xf32>
    tpu.vector_store %arg19[%c0_85, %c0_86], %119 {strides = array<i32>} : memref<8x128xf32, #tpu.memory_space<vmem>>, vector<8x128xf32>,
    %c0_87 = arith.constant 0 : index
    %c0_88 = arith.constant 0 : index
    %140 = vector.load %arg20[%c0_87, %c0_88] : memref<8x128xf32, #tpu.memory_space<vmem>>, vector<8x128xf32>
    tpu.vector_store %arg20[%c0_87, %c0_88], %55 {strides = array<i32>} : memref<8x128xf32, #tpu.memory_space<vmem>>, vector<8x128xf32>,
    %c0_89 = arith.constant 0 : index
    %c0_90 = arith.constant 0 : index
    %141 = vector.load %arg21[%c0_89, %c0_90] : memref<8x128xf32, #tpu.memory_space<vmem>>, vector<8x128xf32>
    tpu.vector_store %arg21[%c0_89, %c0_90], %53 {strides = array<i32>} : memref<8x128xf32, #tpu.memory_space<vmem>>, vector<8x128xf32>,
    %c0_91 = arith.constant 0 : index
    %c0_92 = arith.constant 0 : index
    %c0_93 = arith.constant 0 : index
    %142 = vector.load %arg22[%c0_91, %c0_92, %c0_93] : memref<1x8x128xf32, #tpu.memory_space<vmem>>, vector<1x8x128xf32>
    %143 = vector.shape_cast %142 : vector<1x8x128xf32> to vector<8x128xf32>
    %144 = vector.shape_cast %116 : vector<8x128xf32> to vector<1x8x128xf32>
    tpu.vector_store %arg22[%c0_91, %c0_92, %c0_93], %144 {strides = array<i32>} : memref<1x8x128xf32, #tpu.memory_space<vmem>>, vector<1x8x128xf32>,
    %c0_94 = arith.constant 0 : index
    %c0_95 = arith.constant 0 : index
    %c0_96 = arith.constant 0 : index
    %145 = vector.load %arg23[%c0_94, %c0_95, %c0_96] : memref<1x8x128xf32, #tpu.memory_space<vmem>>, vector<1x8x128xf32>
    %146 = vector.shape_cast %145 : vector<1x8x128xf32> to vector<8x128xf32>
    %147 = vector.shape_cast %114 : vector<8x128xf32> to vector<1x8x128xf32>
    tpu.vector_store %arg23[%c0_94, %c0_95, %c0_96], %147 {strides = array<i32>} : memref<1x8x128xf32, #tpu.memory_space<vmem>>, vector<1x8x128xf32>,
    return
  }
  func.func @transform_0(%arg0: i32, %arg1: memref<1xi32, #tpu.memory_space<smem>>) -> (i32, i32) {
    %c0_i32 = arith.constant 0 : i32
    %c0_i32_0 = arith.constant 0 : i32
    %c0_i32_1 = arith.constant 0 : i32
    return %c0_i32, %c0_i32_0 : i32, i32
  }
  func.func @transform_1(%arg0: i32, %arg1: memref<1xi32, #tpu.memory_space<smem>>) -> (i32, i32) {
    %c0_i32 = arith.constant 0 : i32
    %c0_i32_0 = arith.constant 0 : i32
    %c0_i32_1 = arith.constant 0 : i32
    return %c0_i32, %c0_i32_0 : i32, i32
  }
  func.func @transform_2(%arg0: i32, %arg1: memref<1xi32, #tpu.memory_space<smem>>) -> (i32, i32) {
    %c0_i32 = arith.constant 0 : i32
    %c0_i32_0 = arith.constant 0 : i32
    %c0_i32_1 = arith.constant 0 : i32
    return %c0_i32, %c0_i32_0 : i32, i32
  }
  func.func @transform_3(%arg0: i32, %arg1: memref<1xi32, #tpu.memory_space<smem>>) -> (i32, i32) {
    %c0_i32 = arith.constant 0 : i32
    %c0_i32_0 = arith.constant 0 : i32
    %c0_i32_1 = arith.constant 0 : i32
    return %c0_i32, %c0_i32_0 : i32, i32
  }
  func.func @transform_4(%arg0: i32, %arg1: memref<1xi32, #tpu.memory_space<smem>>) -> (i32, i32) {
    %c0_i32 = arith.constant 0 : i32
    %c0_i32_0 = arith.constant 0 : i32
    %c0_i32_1 = arith.constant 0 : i32
    return %c0_i32, %c0_i32_0 : i32, i32
  }
  func.func @transform_5(%arg0: i32, %arg1: memref<1xi32, #tpu.memory_space<smem>>) -> (i32, i32, i32) {
    %c0 = arith.constant 0 : index
    %0 = memref.load %arg1[%c0] : memref<1xi32, #tpu.memory_space<smem>>
    %c0_i32 = arith.constant 0 : i32
    %c0_i32_0 = arith.constant 0 : i32
    %c0_i32_1 = arith.constant 0 : i32
    return %0, %c0_i32, %c0_i32_0 : i32, i32, i32
  }
  func.func @transform_6(%arg0: i32, %arg1: memref<1xi32, #tpu.memory_space<smem>>) -> (i32, i32, i32) {
    %c0 = arith.constant 0 : index
    %0 = memref.load %arg1[%c0] : memref<1xi32, #tpu.memory_space<smem>>
    %c0_i32 = arith.constant 0 : i32
    %c0_i32_0 = arith.constant 0 : i32
    %c0_i32_1 = arith.constant 0 : i32
    return %0, %c0_i32, %c0_i32_0 : i32, i32, i32
  }
  func.func @transform_7(%arg0: i32, %arg1: memref<1xi32, #tpu.memory_space<smem>>) -> (i32, i32, i32) {
    %c0_i32 = arith.constant 0 : i32
    %c0_i32_0 = arith.constant 0 : i32
    %c0_i32_1 = arith.constant 0 : i32
    %c0_i32_2 = arith.constant 0 : i32
    return %c0_i32, %c0_i32_0, %c0_i32_1 : i32, i32, i32
  }
  func.func @transform_8(%arg0: i32, %arg1: memref<1xi32, #tpu.memory_space<smem>>) -> (i32, i32, i32) {
    %c0_i32 = arith.constant 0 : i32
    %c0_i32_0 = arith.constant 0 : i32
    %c0_i32_1 = arith.constant 0 : i32
    %c0_i32_2 = arith.constant 0 : i32
    return %c0_i32, %c0_i32_0, %c0_i32_1 : i32, i32, i32
  }
  func.func @transform_9(%arg0: i32, %arg1: memref<1xi32, #tpu.memory_space<smem>>) -> (i32, i32, i32) {
    %c0_i32 = arith.constant 0 : i32
    %c0_i32_0 = arith.constant 0 : i32
    %c0_i32_1 = arith.constant 0 : i32
    %c0_i32_2 = arith.constant 0 : i32
    return %c0_i32, %c0_i32_0, %c0_i32_1 : i32, i32, i32
  }
  func.func @transform_10(%arg0: i32, %arg1: memref<1xi32, #tpu.memory_space<smem>>) -> (i32, i32, i32) {
    %c0_i32 = arith.constant 0 : i32
    %c0_i32_0 = arith.constant 0 : i32
    %c0_i32_1 = arith.constant 0 : i32
    %c0_i32_2 = arith.constant 0 : i32
    return %c0_i32, %c0_i32_0, %c0_i32_1 : i32, i32, i32
  }
  func.func @transform_11(%arg0: i32, %arg1: memref<1xi32, #tpu.memory_space<smem>>) -> (i32, i32, i32) {
    %c0_i32 = arith.constant 0 : i32
    %c0_i32_0 = arith.constant 0 : i32
    %c0_i32_1 = arith.constant 0 : i32
    %c0_i32_2 = arith.constant 0 : i32
    return %c0_i32, %c0_i32_0, %c0_i32_1 : i32, i32, i32
  }
  func.func @transform_12(%arg0: i32, %arg1: memref<1xi32, #tpu.memory_space<smem>>) -> (i32, i32, i32) {
    %c0_i32 = arith.constant 0 : i32
    %c0_i32_0 = arith.constant 0 : i32
    %c0_i32_1 = arith.constant 0 : i32
    %c0_i32_2 = arith.constant 0 : i32
    return %c0_i32, %c0_i32_0, %c0_i32_1 : i32, i32, i32
  }
  func.func @transform_13(%arg0: i32, %arg1: memref<1xi32, #tpu.memory_space<smem>>) -> (i32, i32, i32) {
    %c0_i32 = arith.constant 0 : i32
    %c0_i32_0 = arith.constant 0 : i32
    %c0_i32_1 = arith.constant 0 : i32
    %c0_i32_2 = arith.constant 0 : i32
    return %c0_i32, %c0_i32_0, %c0_i32_1 : i32, i32, i32
  }
  func.func @transform_14(%arg0: i32, %arg1: memref<1xi32, #tpu.memory_space<smem>>) -> (i32, i32, i32) {
    %c0_i32 = arith.constant 0 : i32
    %c0_i32_0 = arith.constant 0 : i32
    %c0_i32_1 = arith.constant 0 : i32
    %c0_i32_2 = arith.constant 0 : i32
    return %c0_i32, %c0_i32_0, %c0_i32_1 : i32, i32, i32
  }
  func.func @transform_15(%arg0: i32, %arg1: memref<1xi32, #tpu.memory_space<smem>>) -> (i32, i32) {
    %c0_i32 = arith.constant 0 : i32
    %c0_i32_0 = arith.constant 0 : i32
    %c0_i32_1 = arith.constant 0 : i32
    return %c0_i32, %c0_i32_0 : i32, i32
  }
  func.func @transform_16(%arg0: i32, %arg1: memref<1xi32, #tpu.memory_space<smem>>) -> (i32, i32) {
    %c0_i32 = arith.constant 0 : i32
    %c0_i32_0 = arith.constant 0 : i32
    %c0_i32_1 = arith.constant 0 : i32
    return %c0_i32, %c0_i32_0 : i32, i32
  }
  func.func @transform_17(%arg0: i32, %arg1: memref<1xi32, #tpu.memory_space<smem>>) -> (i32, i32) {
    %c0_i32 = arith.constant 0 : i32
    %c0_i32_0 = arith.constant 0 : i32
    %c0_i32_1 = arith.constant 0 : i32
    return %c0_i32, %c0_i32_0 : i32, i32
  }
  func.func @transform_18(%arg0: i32, %arg1: memref<1xi32, #tpu.memory_space<smem>>) -> (i32, i32) {
    %c0_i32 = arith.constant 0 : i32
    %c0_i32_0 = arith.constant 0 : i32
    %c0_i32_1 = arith.constant 0 : i32
    return %c0_i32, %c0_i32_0 : i32, i32
  }
  func.func @transform_19(%arg0: i32, %arg1: memref<1xi32, #tpu.memory_space<smem>>) -> (i32, i32) {
    %c0_i32 = arith.constant 0 : i32
    %c0_i32_0 = arith.constant 0 : i32
    %c0_i32_1 = arith.constant 0 : i32
    return %c0_i32, %c0_i32_0 : i32, i32
  }
  func.func @transform_20(%arg0: i32, %arg1: memref<1xi32, #tpu.memory_space<smem>>) -> (i32, i32, i32) {
    %c0 = arith.constant 0 : index
    %0 = memref.load %arg1[%c0] : memref<1xi32, #tpu.memory_space<smem>>
    %c0_i32 = arith.constant 0 : i32
    %c0_i32_0 = arith.constant 0 : i32
    %c0_i32_1 = arith.constant 0 : i32
    return %0, %c0_i32, %c0_i32_0 : i32, i32, i32
  }
  func.func @transform_21(%arg0: i32, %arg1: memref<1xi32, #tpu.memory_space<smem>>) -> (i32, i32, i32) {
    %c0 = arith.constant 0 : index
    %0 = memref.load %arg1[%c0] : memref<1xi32, #tpu.memory_space<smem>>
    %c0_i32 = arith.constant 0 : i32
    %c0_i32_0 = arith.constant 0 : i32
    %c0_i32_1 = arith.constant 0 : i32
    return %0, %c0_i32, %c0_i32_0 : i32, i32, i32
  }
}

</mosaic_0001>

<llo_original>
// kernel: tpu_custom_call.1
$region0: #{tpu_custom_call.1}
  #allocation0 [shape = 'u32[]', space=smem, size = 0x4, offset = 0x4, fixed_abs, tag = 'smem constant byte address 0x4 - core index']
  #allocation1 [shape = 'u32[144,128]{1,0:T(1,128)}', space=vmem, size = 0x12000, scoped, tag = 'internal scratch']
  #allocation2 [shape = 's32[1]{0}', space=sflag, size = 0x4, scoped, tag = 'scoped memory for tpu_custom_call.1']
  #allocation3 [shape = 's32[1]{0:T(128)S(6)}', space=smem, size = 0x200, scoped, tag = 'prefetched SMEM operand 0']
  %s0 = inlined_call_operand.<no memory space> [shape: s32[1], index: 0, kind: input, shape index: {}]
  %s1 = inlined_call_operand.vmem [shape: f32[8,128], index: 1, kind: input, shape index: {}]
  %s2 = inlined_call_operand.vmem [shape: f32[8,128], index: 2, kind: input, shape index: {}]
  %s3 = inlined_call_operand.vmem [shape: f32[8,128], index: 3, kind: input, shape index: {}]
  %s4 = inlined_call_operand.vmem [shape: f32[8,128], index: 4, kind: input, shape index: {}]
  %s5 = inlined_call_operand.vmem [shape: f32[8,128], index: 5, kind: input, shape index: {}]
  %s6 = inlined_call_operand.hbm [shape: f32[3,8,128], index: 6, kind: input, shape index: {}, may-alias: {6,21}]
  %s7 = inlined_call_operand.hbm [shape: f32[3,8,128], index: 7, kind: input, shape index: {}, may-alias: {7,22}]
  %s8 = inlined_call_operand.hbm [shape: f32[2,128,128], index: 8, kind: input, shape index: {}]
  %s9 = inlined_call_operand.vmem [shape: f32[2,1,128], index: 9, kind: input, shape index: {}]
  %s10 = inlined_call_operand.hbm [shape: f32[2,128,512], index: 10, kind: input, shape index: {}]
  %s11 = inlined_call_operand.vmem [shape: f32[2,1,512], index: 11, kind: input, shape index: {}]
  %s12 = inlined_call_operand.hbm [shape: f32[2,128,512], index: 12, kind: input, shape index: {}]
  %s13 = inlined_call_operand.vmem [shape: f32[2,1,512], index: 13, kind: input, shape index: {}]
  %s14 = inlined_call_operand.hbm [shape: f32[2,128,128], index: 14, kind: input, shape index: {}]
  %s15 = inlined_call_operand.vmem [shape: f32[2,1,128], index: 15, kind: input, shape index: {}]
  %s16 = inlined_call_operand.hbm [shape: f32[128,128], index: 16, kind: input, shape index: {}]
  %s17 = inlined_call_operand.hbm [shape: f32[8,128], index: 17, kind: output, shape index: {0}]
  %s18 = inlined_call_operand.hbm [shape: f32[8,128], index: 18, kind: output, shape index: {1}]
  %s19 = inlined_call_operand.hbm [shape: f32[8,128], index: 19, kind: output, shape index: {2}]
  %s20 = inlined_call_operand.hbm [shape: f32[8,128], index: 20, kind: output, shape index: {3}]
  %s21 = inlined_call_operand.hbm [shape: f32[3,8,128], index: 21, kind: output, shape index: {4}, may-alias: {6,21}]
  %s22 = inlined_call_operand.hbm [shape: f32[3,8,128], index: 22, kind: output, shape index: {5}, may-alias: {7,22}]
  %23 = xla_tuple %s17, %s18, %s19, %s20, %s21, %s22
  %s24 = sld [smem:[#allocation0]]
  $region142: #{tpu_custom_call.1} parent=0
    _
  %s26 = ssub.s32 1, %s24
  %s27 = scalar_select 0, %s26, %s24
  %28 = sst [smem:[#allocation3]] %s0
  $region1: #{tpu_custom_call.1} parent=0
    #allocation4 [shape = 'u8[4096]{0}', space=vmem, size = 0x1000, scoped, tag = 'input window, operand 6, single buffered']
    #allocation5 [shape = 's32[1]{0}', space=sflag, size = 0x4, scoped, tag = 'scoped memory for tpu_custom_call.1']
    #allocation6 [shape = 's32[1]{0}', space=sflag, size = 0x4, scoped, tag = 'scoped memory for tpu_custom_call.1']
    #allocation7 [shape = 'u8[4096]{0}', space=vmem, size = 0x1000, scoped, tag = 'input window, operand 7, single buffered']
    #allocation8 [shape = 's32[1]{0}', space=sflag, size = 0x4, scoped, tag = 'scoped memory for tpu_custom_call.1']
    #allocation9 [shape = 'u8[131072]{0}', space=vmem, size = 0x20000, scoped, tag = 'input window, operand 8, single buffered']
    #allocation10 [shape = 'u8[524288]{0}', space=vmem, size = 0x80000, scoped, tag = 'input window, operand 10, single buffered']
    #allocation11 [shape = 's32[1]{0}', space=sflag, size = 0x4, scoped, tag = 'scoped memory for tpu_custom_call.1']
    #allocation12 [shape = 'u8[524288]{0}', space=vmem, size = 0x80000, scoped, tag = 'input window, operand 12, single buffered']
    #allocation13 [shape = 'u8[131072]{0}', space=vmem, size = 0x20000, scoped, tag = 'input window, operand 14, single buffered']
    #allocation14 [shape = 's32[1]{0}', space=sflag, size = 0x4, scoped, tag = 'scoped memory for tpu_custom_call.1']
    #allocation15 [shape = 'u8[65536]{0}', space=vmem, size = 0x10000, scoped, tag = 'input window, operand 16, single buffered']
    #allocation16 [shape = 'u8[4096]{0}', space=vmem, size = 0x1000, scoped, tag = 'output window, operand 0, single buffered']
    #allocation17 [shape = 'u8[4096]{0}', space=vmem, size = 0x1000, scoped, tag = 'output window, operand 1, single buffered']
    #allocation18 [shape = 's32[1]{0}', space=sflag, size = 0x4, scoped, tag = 'scoped memory for tpu_custom_call.1']
    #allocation19 [shape = 'u8[4096]{0}', space=vmem, size = 0x1000, scoped, tag = 'output window, operand 2, single buffered']
    #allocation20 [shape = 'u8[4096]{0}', space=vmem, size = 0x1000, scoped, tag = 'output window, operand 3, single buffered']
    #allocation21 [shape = 's32[1]{0}', space=sflag, size = 0x4, scoped, tag = 'scoped memory for tpu_custom_call.1']
    #allocation22 [shape = 'u8[4096]{0}', space=vmem, size = 0x1000, scoped, tag = 'output window, operand 4, single buffered']
    #allocation23 [shape = 'u8[4096]{0}', space=vmem, size = 0x1000, scoped, tag = 'output window, operand 5, single buffered']
    #allocation24 [shape = 's32[1]{0}', space=sflag, size = 0x4, scoped, tag = 'scoped memory for tpu_custom_call.1']
    %29 = vsyncpa [#allocation5], 0
    %30 = vsyncpa [#allocation8], 0
    %31 = vsyncpa [#allocation11], 0
    %32 = vsyncpa [#allocation14], 0
    %33 = vsyncpa [#allocation6], 0
    %34 = vsyncpa [#allocation18], 0
    %35 = vsyncpa [#allocation21], 0
    %36 = vsyncpa [#allocation24], 0
    // Predicated region
    $region2: #{tpu_custom_call.1} parent=1 // pred_check
      _
    $region3: #{tpu_custom_call.1} parent=1 // pred_check_branch
      %38 = sbr.rel (0) target = $region5
    $region4: #{tpu_custom_call.1} parent=1 // pred_region
      _
    $region5: #{tpu_custom_call.1} parent=1 // pred_fallthru
      _
    // Predicated region
    $region6: #{tpu_custom_call.1} parent=1 // pred_check
      _
    $region7: #{tpu_custom_call.1} parent=1 // pred_check_branch
      %40 = sbr.rel (0) target = $region9
    $region8: #{tpu_custom_call.1} parent=1 // pred_region
      _
    $region9: #{tpu_custom_call.1} parent=1 // pred_fallthru
      _
    // Predicated region
    $region10: #{tpu_custom_call.1} parent=1 // pred_check
      _
    $region11: #{tpu_custom_call.1} parent=1 // pred_check_branch
      %42 = sbr.rel (0) target = $region13
    $region12: #{tpu_custom_call.1} parent=1 // pred_region
      _
    $region13: #{tpu_custom_call.1} parent=1 // pred_fallthru
      _
    // Predicated region
    $region14: #{tpu_custom_call.1} parent=1 // pred_check
      _
    $region15: #{tpu_custom_call.1} parent=1 // pred_check_branch
      %44 = sbr.rel (0) target = $region17
    $region16: #{tpu_custom_call.1} parent=1 // pred_region
      _
    $region17: #{tpu_custom_call.1} parent=1 // pred_fallthru
      _
    // Predicated region
    $region18: #{tpu_custom_call.1} parent=1 // pred_check
      _
    $region19: #{tpu_custom_call.1} parent=1 // pred_check_branch
      %46 = sbr.rel (0) target = $region21
    $region20: #{tpu_custom_call.1} parent=1 // pred_region
      _
    $region21: #{tpu_custom_call.1} parent=1 // pred_fallthru
      _
    // Predicated region
    $region22: #{tpu_custom_call.1} parent=1 // pred_check
      _
    $region23: #{tpu_custom_call.1} parent=1 // pred_check_branch
      %48 = sbr.rel (0) target = $region25
    $region24: #{tpu_custom_call.1} parent=1 // pred_region
      %s49 = sld [smem:[#allocation3]]
      %s51 = ssub.s32 128, 128
      %52 = vsyncadd [#allocation5], %s51
      %s53 = smul.addr %s49, 128
      %s54 = scalar_lea.hbm %s6, %s53
      %s56 = sshll.u32 [#allocation4], 4
      %s57 = int_to_ptr.vmem [resolvable:$true] %s56
      %59 = dma.hbm_to_vmem [thread:$0]  %s54, 128, %s57, [#allocation5]
    $region25: #{tpu_custom_call.1} parent=1 // pred_fallthru
      _
    // Predicated region
    $region26: #{tpu_custom_call.1} parent=1 // pred_check
      _
    $region27: #{tpu_custom_call.1} parent=1 // pred_check_branch
      %61 = sbr.rel (0) target = $region29
    $region28: #{tpu_custom_call.1} parent=1 // pred_region
      %s62 = sld [smem:[#allocation3]]
      %s64 = ssub.s32 128, 128
      %65 = vsyncadd [#allocation8], %s64
      %s66 = smul.addr %s62, 128
      %s67 = scalar_lea.hbm %s7, %s66
      %s69 = sshll.u32 [#allocation7], 4
      %s70 = int_to_ptr.vmem [resolvable:$true] %s69
      %72 = dma.hbm_to_vmem [thread:$0]  %s67, 128, %s70, [#allocation8]
    $region29: #{tpu_custom_call.1} parent=1 // pred_fallthru
      _
    // Predicated region
    $region30: #{tpu_custom_call.1} parent=1 // pred_check
      _
    $region31: #{tpu_custom_call.1} parent=1 // pred_check_branch
      %74 = sbr.rel (0) target = $region33
    $region32: #{tpu_custom_call.1} parent=1 // pred_region
      %s76 = ssub.s32 4096, 4096
      %77 = vsyncadd [#allocation8], %s76
      %s78 = sshll.u32 [#allocation9], 4
      %s79 = int_to_ptr.vmem [resolvable:$true] %s78
      %84 = dma.hbm_to_vmem [thread:$0]  %s8, 4096, %s79, [#allocation8], 128, 128, 8
    $region33: #{tpu_custom_call.1} parent=1 // pred_fallthru
      _
    // Predicated region
    $region34: #{tpu_custom_call.1} parent=1 // pred_check
      _
    $region35: #{tpu_custom_call.1} parent=1 // pred_check_branch
      %86 = sbr.rel (0) target = $region37
    $region36: #{tpu_custom_call.1} parent=1 // pred_region
      _
    $region37: #{tpu_custom_call.1} parent=1 // pred_fallthru
      _
    // Predicated region
    $region38: #{tpu_custom_call.1} parent=1 // pred_check
      _
    $region39: #{tpu_custom_call.1} parent=1 // pred_check_branch
      %88 = sbr.rel (0) target = $region41
    $region40: #{tpu_custom_call.1} parent=1 // pred_region
      %s90 = ssub.s32 16384, 16384
      %91 = vsyncadd [#allocation11], %s90
      %s92 = sshll.u32 [#allocation10], 4
      %s93 = int_to_ptr.vmem [resolvable:$true] %s92
      %98 = dma.hbm_to_vmem [thread:$0]  %s10, 16384, %s93, [#allocation11], 512, 512, 32
    $region41: #{tpu_custom_call.1} parent=1 // pred_fallthru
      _
    // Predicated region
    $region42: #{tpu_custom_call.1} parent=1 // pred_check
      _
    $region43: #{tpu_custom_call.1} parent=1 // pred_check_branch
      %100 = sbr.rel (0) target = $region45
    $region44: #{tpu_custom_call.1} parent=1 // pred_region
      _
    $region45: #{tpu_custom_call.1} parent=1 // pred_fallthru
      _
    // Predicated region
    $region46: #{tpu_custom_call.1} parent=1 // pred_check
      _
    $region47: #{tpu_custom_call.1} parent=1 // pred_check_branch
      %102 = sbr.rel (0) target = $region49
    $region48: #{tpu_custom_call.1} parent=1 // pred_region
      %s104 = ssub.s32 16384, 16384
      %105 = vsyncadd [#allocation11], %s104
      %s106 = sshll.u32 [#allocation12], 4
      %s107 = int_to_ptr.vmem [resolvable:$true] %s106
      %112 = dma.hbm_to_vmem [thread:$0]  %s12, 16384, %s107, [#allocation11], 512, 512, 32
    $region49: #{tpu_custom_call.1} parent=1 // pred_fallthru
      _
    // Predicated region
    $region50: #{tpu_custom_call.1} parent=1 // pred_check
      _
    $region51: #{tpu_custom_call.1} parent=1 // pred_check_branch
      %114 = sbr.rel (0) target = $region53
    $region52: #{tpu_custom_call.1} parent=1 // pred_region
      _
    $region53: #{tpu_custom_call.1} parent=1 // pred_fallthru
      _
    // Predicated region
    $region54: #{tpu_custom_call.1} parent=1 // pred_check
      _
    $region55: #{tpu_custom_call.1} parent=1 // pred_check_branch
      %116 = sbr.rel (0) target = $region57
    $region56: #{tpu_custom_call.1} parent=1 // pred_region
      %s118 = ssub.s32 4096, 4096
      %119 = vsyncadd [#allocation14], %s118
      %s120 = sshll.u32 [#allocation13], 4
      %s121 = int_to_ptr.vmem [resolvable:$true] %s120
      %126 = dma.hbm_to_vmem [thread:$0]  %s14, 4096, %s121, [#allocation14], 128, 128, 8
    $region57: #{tpu_custom_call.1} parent=1 // pred_fallthru
      _
    // Predicated region
    $region58: #{tpu_custom_call.1} parent=1 // pred_check
      _
    $region59: #{tpu_custom_call.1} parent=1 // pred_check_branch
      %128 = sbr.rel (0) target = $region61
    $region60: #{tpu_custom_call.1} parent=1 // pred_region
      _
    $region61: #{tpu_custom_call.1} parent=1 // pred_fallthru
      _
    // Predicated region
    $region62: #{tpu_custom_call.1} parent=1 // pred_check
      _
    $region63: #{tpu_custom_call.1} parent=1 // pred_check_branch
      %130 = sbr.rel (0) target = $region65
    $region64: #{tpu_custom_call.1} parent=1 // pred_region
      %s132 = ssub.s32 2048, 2048
      %133 = vsyncadd [#allocation14], %s132
      %s134 = sshll.u32 [#allocation15], 4
      %s135 = int_to_ptr.vmem [resolvable:$true] %s134
      %140 = dma.hbm_to_vmem [thread:$0]  %s16, 2048, %s135, [#allocation14], 128, 128, 8
    $region65: #{tpu_custom_call.1} parent=1 // pred_fallthru
      _
    // Predicated region
    $region66: #{tpu_custom_call.1} parent=1 // pred_check
      _
    $region67: #{tpu_custom_call.1} parent=1 // pred_check_branch
      %142 = sbr.rel (0) target = $region69
    $region68: #{tpu_custom_call.1} parent=1 // pred_region
      %143 = dma.done [#allocation5], 128
    $region69: #{tpu_custom_call.1} parent=1 // pred_fallthru
      _
    // Predicated region
    $region70: #{tpu_custom_call.1} parent=1 // pred_check
      _
    $region71: #{tpu_custom_call.1} parent=1 // pred_check_branch
      %145 = sbr.rel (0) target = $region73
    $region72: #{tpu_custom_call.1} parent=1 // pred_region
      %146 = dma.done [#allocation8], 128
    $region73: #{tpu_custom_call.1} parent=1 // pred_fallthru
      _
    // Predicated region
    $region74: #{tpu_custom_call.1} parent=1 // pred_check
      _
    $region75: #{tpu_custom_call.1} parent=1 // pred_check_branch
      %148 = sbr.rel (0) target = $region77
    $region76: #{tpu_custom_call.1} parent=1 // pred_region
      %149 = dma.done [#allocation8], 4096
    $region77: #{tpu_custom_call.1} parent=1 // pred_fallthru
      _
    // Predicated region
    $region78: #{tpu_custom_call.1} parent=1 // pred_check
      _
    $region79: #{tpu_custom_call.1} parent=1 // pred_check_branch
      %151 = sbr.rel (0) target = $region81
    $region80: #{tpu_custom_call.1} parent=1 // pred_region
      %152 = dma.done [#allocation11], 16384
    $region81: #{tpu_custom_call.1} parent=1 // pred_fallthru
      _
    // Predicated region
    $region82: #{tpu_custom_call.1} parent=1 // pred_check
      _
    $region83: #{tpu_custom_call.1} parent=1 // pred_check_branch
      %154 = sbr.rel (0) target = $region85
    $region84: #{tpu_custom_call.1} parent=1 // pred_region
      %155 = dma.done [#allocation11], 16384
    $region85: #{tpu_custom_call.1} parent=1 // pred_fallthru
      _
    // Predicated region
    $region86: #{tpu_custom_call.1} parent=1 // pred_check
      _
    $region87: #{tpu_custom_call.1} parent=1 // pred_check_branch
      %157 = sbr.rel (0) target = $region89
    $region88: #{tpu_custom_call.1} parent=1 // pred_region
      %158 = dma.done [#allocation14], 4096
    $region89: #{tpu_custom_call.1} parent=1 // pred_fallthru
      _
    // Predicated region
    $region90: #{tpu_custom_call.1} parent=1 // pred_check
      _
    $region91: #{tpu_custom_call.1} parent=1 // pred_check_branch
      %160 = sbr.rel (0) target = $region93
    $region92: #{tpu_custom_call.1} parent=1 // pred_region
      %161 = dma.done [#allocation14], 2048
    $region93: #{tpu_custom_call.1} parent=1 // pred_fallthru
      _
    %s162 = sld [smem:[#allocation3]]
    %s163 = sld [smem:[#allocation3]]
    %s164 = sld [smem:[#allocation3]]
    %s165 = sld [smem:[#allocation3]]
    %v166 = vld [vmem:[%s1] sm:$0xff]
    %v167 = vld [vmem:[%s4] sm:$0xff]
    %v168 = vld [vmem:[%s5] sm:$0xff]
    %v169 = vld [vmem:[#allocation9] sm:$0xff]
    %v170 = vld [vmem:[#allocation9 + $0x8] sm:$0xff]
    %v171 = vld [vmem:[#allocation9 + $0x10] sm:$0xff]
    %v172 = vld [vmem:[#allocation9 + $0x18] sm:$0xff]
    %v173 = vld [vmem:[#allocation9 + $0x20] sm:$0xff]
    %v174 = vld [vmem:[#allocation9 + $0x28] sm:$0xff]
    %v175 = vld [vmem:[#allocation9 + $0x30] sm:$0xff]
    %v176 = vld [vmem:[#allocation9 + $0x38] sm:$0xff]
    %v177 = vld [vmem:[#allocation9 + $0x40] sm:$0xff]
    %v178 = vld [vmem:[#allocation9 + $0x48] sm:$0xff]
    %v179 = vld [vmem:[#allocation9 + $0x50] sm:$0xff]
    %v180 = vld [vmem:[#allocation9 + $0x58] sm:$0xff]
    %v181 = vld [vmem:[#allocation9 + $0x60] sm:$0xff]
    %v182 = vld [vmem:[#allocation9 + $0x68] sm:$0xff]
    %v183 = vld [vmem:[#allocation9 + $0x70] sm:$0xff]
    %v184 = vld [vmem:[#allocation9 + $0x78] sm:$0xff]
    %v185 = vld [vmem:[%s9] sm:$0x1]
    %v186 = vld [vmem:[#allocation10] sm:$0xff]
    %v187 = vld [vmem:[#allocation10 + $0x8] sm:$0xff]
    %v188 = vld [vmem:[#allocation10 + $0x10] sm:$0xff]
    %v189 = vld [vmem:[#allocation10 + $0x18] sm:$0xff]
    %v190 = vld [vmem:[#allocation10 + $0x20] sm:$0xff]
    %v191 = vld [vmem:[#allocation10 + $0x28] sm:$0xff]
    %v192 = vld [vmem:[#allocation10 + $0x30] sm:$0xff]
    %v193 = vld [vmem:[#allocation10 + $0x38] sm:$0xff]
    %v194 = vld [vmem:[#allocation10 + $0x40] sm:$0xff]
    %v195 = vld [vmem:[#allocation10 + $0x48] sm:$0xff]
    %v196 = vld [vmem:[#allocation10 + $0x50] sm:$0xff]
    %v197 = vld [vmem:[#allocation10 + $0x58] sm:$0xff]
    %v198 = vld [vmem:[#allocation10 + $0x60] sm:$0xff]
    %v199 = vld [vmem:[#allocation10 + $0x68] sm:$0xff]
    %v200 = vld [vmem:[#allocation10 + $0x70] sm:$0xff]
    %v201 = vld [vmem:[#allocation10 + $0x78] sm:$0xff]
    %v202 = vld [vmem:[#allocation10 + $0x80] sm:$0xff]
    %v203 = vld [vmem:[#allocation10 + $0x88] sm:$0xff]
    %v204 = vld [vmem:[#allocation10 + $0x90] sm:$0xff]
    %v205 = vld [vmem:[#allocation10 + $0x98] sm:$0xff]
    %v206 = vld [vmem:[#allocation10 + $0xa0] sm:$0xff]
    %v207 = vld [vmem:[#allocation10 + $0xa8] sm:$0xff]
    %v208 = vld [vmem:[#allocation10 + $0xb0] sm:$0xff]
    %v209 = vld [vmem:[#allocation10 + $0xb8] sm:$0xff]
    %v210 = vld [vmem:[#allocation10 + $0xc0] sm:$0xff]
    %v211 = vld [vmem:[#allocation10 + $0xc8] sm:$0xff]
    %v212 = vld [vmem:[#allocation10 + $0xd0] sm:$0xff]
    %v213 = vld [vmem:[#allocation10 + $0xd8] sm:$0xff]
    %v214 = vld [vmem:[#allocation10 + $0xe0] sm:$0xff]
    %v215 = vld [vmem:[#allocation10 + $0xe8] sm:$0xff]
    %v216 = vld [vmem:[#allocation10 + $0xf0] sm:$0xff]
    %v217 = vld [vmem:[#allocation10 + $0xf8] sm:$0xff]
    %v218 = vld [vmem:[#allocation10 + $0x100] sm:$0xff]
    %v219 = vld [vmem:[#allocation10 + $0x108] sm:$0xff]
    %v220 = vld [vmem:[#allocation10 + $0x110] sm:$0xff]
    %v221 = vld [vmem:[#allocation10 + $0x118] sm:$0xff]
    %v222 = vld [vmem:[#allocation10 + $0x120] sm:$0xff]
    %v223 = vld [vmem:[#allocation10 + $0x128] sm:$0xff]
    %v224 = vld [vmem:[#allocation10 + $0x130] sm:$0xff]
    %v225 = vld [vmem:[#allocation10 + $0x138] sm:$0xff]
    %v226 = vld [vmem:[#allocation10 + $0x140] sm:$0xff]
    %v227 = vld [vmem:[#allocation10 + $0x148] sm:$0xff]
    %v228 = vld [vmem:[#allocation10 + $0x150] sm:$0xff]
    %v229 = vld [vmem:[#allocation10 + $0x158] sm:$0xff]
    %v230 = vld [vmem:[#allocation10 + $0x160] sm:$0xff]
    %v231 = vld [vmem:[#allocation10 + $0x168] sm:$0xff]
    %v232 = vld [vmem:[#allocation10 + $0x170] sm:$0xff]
    %v233 = vld [vmem:[#allocation10 + $0x178] sm:$0xff]
    %v234 = vld [vmem:[#allocation10 + $0x180] sm:$0xff]
    %v235 = vld [vmem:[#allocation10 + $0x188] sm:$0xff]
    %v236 = vld [vmem:[#allocation10 + $0x190] sm:$0xff]
    %v237 = vld [vmem:[#allocation10 + $0x198] sm:$0xff]
    %v238 = vld [vmem:[#allocation10 + $0x1a0] sm:$0xff]
    %v239 = vld [vmem:[#allocation10 + $0x1a8] sm:$0xff]
    %v240 = vld [vmem:[#allocation10 + $0x1b0] sm:$0xff]
    %v241 = vld [vmem:[#allocation10 + $0x1b8] sm:$0xff]
    %v242 = vld [vmem:[#allocation10 + $0x1c0] sm:$0xff]
    %v243 = vld [vmem:[#allocation10 + $0x1c8] sm:$0xff]
    %v244 = vld [vmem:[#allocation10 + $0x1d0] sm:$0xff]
    %v245 = vld [vmem:[#allocation10 + $0x1d8] sm:$0xff]
    %v246 = vld [vmem:[#allocation10 + $0x1e0] sm:$0xff]
    %v247 = vld [vmem:[#allocation10 + $0x1e8] sm:$0xff]
    %v248 = vld [vmem:[#allocation10 + $0x1f0] sm:$0xff]
    %v249 = vld [vmem:[#allocation10 + $0x1f8] sm:$0xff]
    %v250 = vld [vmem:[%s11] sm:$0xf]
    %v251 = vld [vmem:[#allocation12] sm:$0xff]
    %v252 = vld [vmem:[#allocation12 + $0x8] sm:$0xff]
    %v253 = vld [vmem:[#allocation12 + $0x10] sm:$0xff]
    %v254 = vld [vmem:[#allocation12 + $0x18] sm:$0xff]
    %v255 = vld [vmem:[#allocation12 + $0x20] sm:$0xff]
    %v256 = vld [vmem:[#allocation12 + $0x28] sm:$0xff]
    %v257 = vld [vmem:[#allocation12 + $0x30] sm:$0xff]
    %v258 = vld [vmem:[#allocation12 + $0x38] sm:$0xff]
    %v259 = vld [vmem:[#allocation12 + $0x40] sm:$0xff]
    %v260 = vld [vmem:[#allocation12 + $0x48] sm:$0xff]
    %v261 = vld [vmem:[#allocation12 + $0x50] sm:$0xff]
    %v262 = vld [vmem:[#allocation12 + $0x58] sm:$0xff]
    %v263 = vld [vmem:[#allocation12 + $0x60] sm:$0xff]
    %v264 = vld [vmem:[#allocation12 + $0x68] sm:$0xff]
    %v265 = vld [vmem:[#allocation12 + $0x70] sm:$0xff]
    %v266 = vld [vmem:[#allocation12 + $0x78] sm:$0xff]
    %v267 = vld [vmem:[#allocation12 + $0x80] sm:$0xff]
    %v268 = vld [vmem:[#allocation12 + $0x88] sm:$0xff]
    %v269 = vld [vmem:[#allocation12 + $0x90] sm:$0xff]
    %v270 = vld [vmem:[#allocation12 + $0x98] sm:$0xff]
    %v271 = vld [vmem:[#allocation12 + $0xa0] sm:$0xff]
    %v272 = vld [vmem:[#allocation12 + $0xa8] sm:$0xff]
    %v273 = vld [vmem:[#allocation12 + $0xb0] sm:$0xff]
    %v274 = vld [vmem:[#allocation12 + $0xb8] sm:$0xff]
    %v275 = vld [vmem:[#allocation12 + $0xc0] sm:$0xff]
    %v276 = vld [vmem:[#allocation12 + $0xc8] sm:$0xff]
    %v277 = vld [vmem:[#allocation12 + $0xd0] sm:$0xff]
    %v278 = vld [vmem:[#allocation12 + $0xd8] sm:$0xff]
    %v279 = vld [vmem:[#allocation12 + $0xe0] sm:$0xff]
    %v280 = vld [vmem:[#allocation12 + $0xe8] sm:$0xff]
    %v281 = vld [vmem:[#allocation12 + $0xf0] sm:$0xff]
    %v282 = vld [vmem:[#allocation12 + $0xf8] sm:$0xff]
    %v283 = vld [vmem:[#allocation12 + $0x100] sm:$0xff]
    %v284 = vld [vmem:[#allocation12 + $0x108] sm:$0xff]
    %v285 = vld [vmem:[#allocation12 + $0x110] sm:$0xff]
    %v286 = vld [vmem:[#allocation12 + $0x118] sm:$0xff]
    %v287 = vld [vmem:[#allocation12 + $0x120] sm:$0xff]
    %v288 = vld [vmem:[#allocation12 + $0x128] sm:$0xff]
    %v289 = vld [vmem:[#allocation12 + $0x130] sm:$0xff]
    %v290 = vld [vmem:[#allocation12 + $0x138] sm:$0xff]
    %v291 = vld [vmem:[#allocation12 + $0x140] sm:$0xff]
    %v292 = vld [vmem:[#allocation12 + $0x148] sm:$0xff]
    %v293 = vld [vmem:[#allocation12 + $0x150] sm:$0xff]
    %v294 = vld [vmem:[#allocation12 + $0x158] sm:$0xff]
    %v295 = vld [vmem:[#allocation12 + $0x160] sm:$0xff]
    %v296 = vld [vmem:[#allocation12 + $0x168] sm:$0xff]
    %v297 = vld [vmem:[#allocation12 + $0x170] sm:$0xff]
    %v298 = vld [vmem:[#allocation12 + $0x178] sm:$0xff]
    %v299 = vld [vmem:[#allocation12 + $0x180] sm:$0xff]
    %v300 = vld [vmem:[#allocation12 + $0x188] sm:$0xff]
    %v301 = vld [vmem:[#allocation12 + $0x190] sm:$0xff]
    %v302 = vld [vmem:[#allocation12 + $0x198] sm:$0xff]
    %v303 = vld [vmem:[#allocation12 + $0x1a0] sm:$0xff]
    %v304 = vld [vmem:[#allocation12 + $0x1a8] sm:$0xff]
    %v305 = vld [vmem:[#allocation12 + $0x1b0] sm:$0xff]
    %v306 = vld [vmem:[#allocation12 + $0x1b8] sm:$0xff]
    %v307 = vld [vmem:[#allocation12 + $0x1c0] sm:$0xff]
    %v308 = vld [vmem:[#allocation12 + $0x1c8] sm:$0xff]
    %v309 = vld [vmem:[#allocation12 + $0x1d0] sm:$0xff]
    %v310 = vld [vmem:[#allocation12 + $0x1d8] sm:$0xff]
    %v311 = vld [vmem:[#allocation12 + $0x1e0] sm:$0xff]
    %v312 = vld [vmem:[#allocation12 + $0x1e8] sm:$0xff]
    %v313 = vld [vmem:[#allocation12 + $0x1f0] sm:$0xff]
    %v314 = vld [vmem:[#allocation12 + $0x1f8] sm:$0xff]
    %v315 = vld [vmem:[%s13] sm:$0xf]
    %v316 = vld [vmem:[#allocation13] sm:$0xff]
    %v317 = vld [vmem:[#allocation13 + $0x8] sm:$0xff]
    %v318 = vld [vmem:[#allocation13 + $0x10] sm:$0xff]
    %v319 = vld [vmem:[#allocation13 + $0x18] sm:$0xff]
    %v320 = vld [vmem:[#allocation13 + $0x20] sm:$0xff]
    %v321 = vld [vmem:[#allocation13 + $0x28] sm:$0xff]
    %v322 = vld [vmem:[#allocation13 + $0x30] sm:$0xff]
    %v323 = vld [vmem:[#allocation13 + $0x38] sm:$0xff]
    %v324 = vld [vmem:[#allocation13 + $0x40] sm:$0xff]
    %v325 = vld [vmem:[#allocation13 + $0x48] sm:$0xff]
    %v326 = vld [vmem:[#allocation13 + $0x50] sm:$0xff]
    %v327 = vld [vmem:[#allocation13 + $0x58] sm:$0xff]
    %v328 = vld [vmem:[#allocation13 + $0x60] sm:$0xff]
    %v329 = vld [vmem:[#allocation13 + $0x68] sm:$0xff]
    %v330 = vld [vmem:[#allocation13 + $0x70] sm:$0xff]
    %v331 = vld [vmem:[#allocation13 + $0x78] sm:$0xff]
    %v332 = vld [vmem:[%s15] sm:$0x1]
    %v334 = vlaneseq
    %v335 = vshrl.u32 %v334, 7
    %v336 = vsub.s32 0, %v335
    %v337 = vrot.slane %v185, %v336
    %339 = vmatprep.subr.mxu0 0.0
    %340 = vmatpush1.msra.mxu0 %v169
    %341 = vmatprep.subr.mxu0 0.0
    %342 = vmatpush1.msra.mxu0 %v170
    %343 = vmatprep.subr.mxu0 0.0
    %344 = vmatpush1.msra.mxu0 %v171
    %345 = vmatprep.subr.mxu0 0.0
    %346 = vmatpush1.msra.mxu0 %v172
    %347 = vmatprep.subr.mxu0 0.0
    %348 = vmatpush1.msra.mxu0 %v173
    %349 = vmatprep.subr.mxu0 0.0
    %350 = vmatpush1.msra.mxu0 %v174
    %351 = vmatprep.subr.mxu0 0.0
    %352 = vmatpush1.msra.mxu0 %v175
    %353 = vmatprep.subr.mxu0 0.0
    %354 = vmatpush1.msra.mxu0 %v176
    %355 = vmatprep.subr.mxu0 0.0
    %356 = vmatpush1.msra.mxu0 %v177
    %357 = vmatprep.subr.mxu0 0.0
    %358 = vmatpush1.msra.mxu0 %v178
    %359 = vmatprep.subr.mxu0 0.0
    %360 = vmatpush1.msra.mxu0 %v179
    %361 = vmatprep.subr.mxu0 0.0
    %362 = vmatpush1.msra.mxu0 %v180
    %363 = vmatprep.subr.mxu0 0.0
    %364 = vmatpush1.msra.mxu0 %v181
    %365 = vmatprep.subr.mxu0 0.0
    %366 = vmatpush1.msra.mxu0 %v182
    %367 = vmatprep.subr.mxu0 0.0
    %368 = vmatpush1.msra.mxu0 %v183
    %369 = vmatprep.subr.mxu0 0.0
    %370 = vmatpush1.msra.mxu0 %v184
    %371 = vmatprep.subr.mxu0 0.0
    %372 = vmatpush1.msra.mxu0 0.0
    %373 = vmatprep.subr.mxu0 0.0
    %374 = vmatpush1.msra.mxu0 0.0
    %375 = vmatprep.subr.mxu0 0.0
    %376 = vmatpush1.msra.mxu0 0.0
    %377 = vmatprep.subr.mxu0 0.0
    %378 = vmatpush1.msra.mxu0 0.0
    %379 = vmatprep.subr.mxu0 0.0
    %380 = vmatpush1.msra.mxu0 0.0
    %381 = vmatprep.subr.mxu0 0.0
    %382 = vmatpush1.msra.mxu0 0.0
    %383 = vmatprep.subr.mxu0 0.0
    %384 = vmatpush1.msra.mxu0 0.0
    %385 = vmatprep.subr.mxu0 0.0
    %386 = vmatpush1.msra.mxu0 0.0
    %387 = vmatprep.subr.mxu0 0.0
    %388 = vmatpush1.msra.mxu0 0.0
    %389 = vmatprep.subr.mxu0 0.0
    %390 = vmatpush1.msra.mxu0 0.0
    %391 = vmatprep.subr.mxu0 0.0
    %392 = vmatpush1.msra.mxu0 0.0
    %393 = vmatprep.subr.mxu0 0.0
    %394 = vmatpush1.msra.mxu0 0.0
    %395 = vmatprep.subr.mxu0 0.0
    %396 = vmatpush1.msra.mxu0 0.0
    %397 = vmatprep.subr.mxu0 0.0
    %398 = vmatpush1.msra.mxu0 0.0
    %399 = vmatprep.subr.mxu0 0.0
    %400 = vmatpush1.msra.mxu0 0.0
    %401 = vmatprep.subr.mxu0 0.0
    %402 = vmatpush1.msra.mxu0 0.0
    %403 = vmatprep.mubr.f32.mxu0 0.0
    %404 = vmatmul.mubr.f32.gmra.mrb[0].mxu0 %v166
    %v405 = vpop.f32.mrb[0].mxu0
    %v406 = vadd.f32 %v337, %v405
    %v407 = vpop.f32.mrb[0].mxu0
    %408 = vdwg.mxu0
    %v409 = vmax.f32 %v406, 0.0
    %v411 = vlaneseq
    %v412 = vshrl.u32 %v411, 7
    %v413 = vsub.s32 0, %v412
    %v414 = vrot.slane %v250, %v413
    %v415 = vlaneseq
    %v416 = vshrl.u32 %v415, 7
    %v417 = vsub.s32 1, %v416
    %v418 = vrot.slane %v250, %v417
    %v419 = vlaneseq
    %v420 = vshrl.u32 %v419, 7
    %v421 = vsub.s32 2, %v420
    %v422 = vrot.slane %v250, %v421
    %v423 = vlaneseq
    %v424 = vshrl.u32 %v423, 7
    %v425 = vsub.s32 3, %v424
    %v426 = vrot.slane %v250, %v425
    %431 = vmatprep.subr.mxu0 %v187
    %432 = vmatpush1.msra.mxu0 %v186
    %433 = vmatprep.subr.mxu0 %v191
    %434 = vmatpush1.msra.mxu0 %v190
    %435 = vmatprep.subr.mxu0 %v195
    %436 = vmatpush1.msra.mxu0 %v194
    %437 = vmatprep.subr.mxu0 %v199
    %438 = vmatpush1.msra.mxu0 %v198
    %439 = vmatprep.subr.mxu0 %v203
    %440 = vmatpush1.msra.mxu0 %v202
    %441 = vmatprep.subr.mxu0 %v207
    %442 = vmatpush1.msra.mxu0 %v206
    %443 = vmatprep.subr.mxu0 %v211
    %444 = vmatpush1.msra.mxu0 %v210
    %445 = vmatprep.subr.mxu0 %v215
    %446 = vmatpush1.msra.mxu0 %v214
    %447 = vmatprep.subr.mxu0 %v219
    %448 = vmatpush1.msra.mxu0 %v218
    %449 = vmatprep.subr.mxu0 %v223
    %450 = vmatpush1.msra.mxu0 %v222
    %451 = vmatprep.subr.mxu0 %v227
    %452 = vmatpush1.msra.mxu0 %v226
    %453 = vmatprep.subr.mxu0 %v231
    %454 = vmatpush1.msra.mxu0 %v230
    %455 = vmatprep.subr.mxu0 %v235
    %456 = vmatpush1.msra.mxu0 %v234
    %457 = vmatprep.subr.mxu0 %v239
    %458 = vmatpush1.msra.mxu0 %v238
    %459 = vmatprep.subr.mxu0 %v243
    %460 = vmatpush1.msra.mxu0 %v242
    %461 = vmatprep.subr.mxu0 %v247
    %462 = vmatpush1.msra.mxu0 %v246
    %463 = vmatprep.subr.mxu0 0.0
    %464 = vmatpush1.msra.mxu0 0.0
    %465 = vmatprep.subr.mxu0 0.0
    %466 = vmatpush1.msra.mxu0 0.0
    %467 = vmatprep.subr.mxu0 0.0
    %468 = vmatpush1.msra.mxu0 0.0
    %469 = vmatprep.subr.mxu0 0.0
    %470 = vmatpush1.msra.mxu0 0.0
    %471 = vmatprep.subr.mxu0 0.0
    %472 = vmatpush1.msra.mxu0 0.0
    %473 = vmatprep.subr.mxu0 0.0
    %474 = vmatpush1.msra.mxu0 0.0
    %475 = vmatprep.subr.mxu0 0.0
    %476 = vmatpush1.msra.mxu0 0.0
    %477 = vmatprep.subr.mxu0 0.0
    %478 = vmatpush1.msra.mxu0 0.0
    %479 = vmatprep.subr.mxu0 0.0
    %480 = vmatpush1.msra.mxu0 0.0
    %481 = vmatprep.subr.mxu0 0.0
    %482 = vmatpush1.msra.mxu0 0.0
    %483 = vmatprep.subr.mxu0 0.0
    %484 = vmatpush1.msra.mxu0 0.0
    %485 = vmatprep.subr.mxu0 0.0
    %486 = vmatpush1.msra.mxu0 0.0
    %487 = vmatprep.subr.mxu0 0.0
    %488 = vmatpush1.msra.mxu0 0.0
    %489 = vmatprep.subr.mxu0 0.0
    %490 = vmatpush1.msra.mxu0 0.0
    %491 = vmatprep.subr.mxu0 0.0
    %492 = vmatpush1.msra.mxu0 0.0
    %493 = vmatprep.subr.mxu0 0.0
    %494 = vmatpush1.msra.mxu0 0.0
    %495 = vmatprep.mubr.f32.mxu0 0.0
    %496 = vmatmul.mubr.f32.gmra.mrb[0].mxu0 %v409
    %v497 = vpop.f32.mrb[0].mxu0
    %v498 = vadd.f32 %v414, %v497
    %v499 = vpop.f32.mrb[0].mxu0
    %v500 = vadd.f32 %v418, %v499
    %501 = vdwg.mxu0
    %502 = vmatprep.subr.mxu0 %v189
    %503 = vmatpush1.msra.mxu0 %v188
    %504 = vmatprep.subr.mxu0 %v193
    %505 = vmatpush1.msra.mxu0 %v192
    %506 = vmatprep.subr.mxu0 %v197
    %507 = vmatpush1.msra.mxu0 %v196
    %508 = vmatprep.subr.mxu0 %v201
    %509 = vmatpush1.msra.mxu0 %v200
    %510 = vmatprep.subr.mxu0 %v205
    %511 = vmatpush1.msra.mxu0 %v204
    %512 = vmatprep.subr.mxu0 %v209
    %513 = vmatpush1.msra.mxu0 %v208
    %514 = vmatprep.subr.mxu0 %v213
    %515 = vmatpush1.msra.mxu0 %v212
    %516 = vmatprep.subr.mxu0 %v217
    %517 = vmatpush1.msra.mxu0 %v216
    %518 = vmatprep.subr.mxu0 %v221
    %519 = vmatpush1.msra.mxu0 %v220
    %520 = vmatprep.subr.mxu0 %v225
    %521 = vmatpush1.msra.mxu0 %v224
    %522 = vmatprep.subr.mxu0 %v229
    %523 = vmatpush1.msra.mxu0 %v228
    %524 = vmatprep.subr.mxu0 %v233
    %525 = vmatpush1.msra.mxu0 %v232
    %526 = vmatprep.subr.mxu0 %v237
    %527 = vmatpush1.msra.mxu0 %v236
    %528 = vmatprep.subr.mxu0 %v241
    %529 = vmatpush1.msra.mxu0 %v240
    %530 = vmatprep.subr.mxu0 %v245
    %531 = vmatpush1.msra.mxu0 %v244
    %532 = vmatprep.subr.mxu0 %v249
    %533 = vmatpush1.msra.mxu0 %v248
    %534 = vmatprep.subr.mxu0 0.0
    %535 = vmatpush1.msra.mxu0 0.0
    %536 = vmatprep.subr.mxu0 0.0
    %537 = vmatpush1.msra.mxu0 0.0
    %538 = vmatprep.subr.mxu0 0.0
    %539 = vmatpush1.msra.mxu0 0.0
    %540 = vmatprep.subr.mxu0 0.0
    %541 = vmatpush1.msra.mxu0 0.0
    %542 = vmatprep.subr.mxu0 0.0
    %543 = vmatpush1.msra.mxu0 0.0
    %544 = vmatprep.subr.mxu0 0.0
    %545 = vmatpush1.msra.mxu0 0.0
    %546 = vmatprep.subr.mxu0 0.0
    %547 = vmatpush1.msra.mxu0 0.0
    %548 = vmatprep.subr.mxu0 0.0
    %549 = vmatpush1.msra.mxu0 0.0
    %550 = vmatprep.subr.mxu0 0.0
    %551 = vmatpush1.msra.mxu0 0.0
    %552 = vmatprep.subr.mxu0 0.0
    %553 = vmatpush1.msra.mxu0 0.0
    %554 = vmatprep.subr.mxu0 0.0
    %555 = vmatpush1.msra.mxu0 0.0
    %556 = vmatprep.subr.mxu0 0.0
    %557 = vmatpush1.msra.mxu0 0.0
    %558 = vmatprep.subr.mxu0 0.0
    %559 = vmatpush1.msra.mxu0 0.0
    %560 = vmatprep.subr.mxu0 0.0
    %561 = vmatpush1.msra.mxu0 0.0
    %562 = vmatprep.subr.mxu0 0.0
    %563 = vmatpush1.msra.mxu0 0.0
    %564 = vmatprep.subr.mxu0 0.0
    %565 = vmatpush1.msra.mxu0 0.0
    %566 = vmatprep.mubr.f32.mxu0 0.0
    %567 = vmatmul.mubr.f32.gmra.mrb[0].mxu0 %v409
    %v568 = vpop.f32.mrb[0].mxu0
    %v569 = vadd.f32 %v422, %v568
    %v570 = vpop.f32.mrb[0].mxu0
    %v571 = vadd.f32 %v426, %v570
    %572 = vdwg.mxu0
    %573 = vmatprep.subr.mxu0 %v252
    %574 = vmatpush1.msra.mxu0 %v251
    %575 = vmatprep.subr.mxu0 %v256
    %576 = vmatpush1.msra.mxu0 %v255
    %577 = vmatprep.subr.mxu0 %v260
    %578 = vmatpush1.msra.mxu0 %v259
    %579 = vmatprep.subr.mxu0 %v264
    %580 = vmatpush1.msra.mxu0 %v263
    %581 = vmatprep.subr.mxu0 %v268
    %582 = vmatpush1.msra.mxu0 %v267
    %583 = vmatprep.subr.mxu0 %v272
    %584 = vmatpush1.msra.mxu0 %v271
    %585 = vmatprep.subr.mxu0 %v276
    %586 = vmatpush1.msra.mxu0 %v275
    %587 = vmatprep.subr.mxu0 %v280
    %588 = vmatpush1.msra.mxu0 %v279
    %589 = vmatprep.subr.mxu0 %v284
    %590 = vmatpush1.msra.mxu0 %v283
    %591 = vmatprep.subr.mxu0 %v288
    %592 = vmatpush1.msra.mxu0 %v287
    %593 = vmatprep.subr.mxu0 %v292
    %594 = vmatpush1.msra.mxu0 %v291
    %595 = vmatprep.subr.mxu0 %v296
    %596 = vmatpush1.msra.mxu0 %v295
    %597 = vmatprep.subr.mxu0 %v300
    %598 = vmatpush1.msra.mxu0 %v299
    %599 = vmatprep.subr.mxu0 %v304
    %600 = vmatpush1.msra.mxu0 %v303
    %601 = vmatprep.subr.mxu0 %v308
    %602 = vmatpush1.msra.mxu0 %v307
    %603 = vmatprep.subr.mxu0 %v312
    %604 = vmatpush1.msra.mxu0 %v311
    %605 = vmatprep.subr.mxu0 0.0
    %606 = vmatpush1.msra.mxu0 0.0
    %607 = vmatprep.subr.mxu0 0.0
    %608 = vmatpush1.msra.mxu0 0.0
    %609 = vmatprep.subr.mxu0 0.0
    %610 = vmatpush1.msra.mxu0 0.0
    %611 = vmatprep.subr.mxu0 0.0
    %612 = vmatpush1.msra.mxu0 0.0
    %613 = vmatprep.subr.mxu0 0.0
    %614 = vmatpush1.msra.mxu0 0.0
    %615 = vmatprep.subr.mxu0 0.0
    %616 = vmatpush1.msra.mxu0 0.0
    %617 = vmatprep.subr.mxu0 0.0
    %618 = vmatpush1.msra.mxu0 0.0
    %619 = vmatprep.subr.mxu0 0.0
    %620 = vmatpush1.msra.mxu0 0.0
    %621 = vmatprep.subr.mxu0 0.0
    %622 = vmatpush1.msra.mxu0 0.0
    %623 = vmatprep.subr.mxu0 0.0
    %624 = vmatpush1.msra.mxu0 0.0
    %625 = vmatprep.subr.mxu0 0.0
    %626 = vmatpush1.msra.mxu0 0.0
    %627 = vmatprep.subr.mxu0 0.0
    %628 = vmatpush1.msra.mxu0 0.0
    %629 = vmatprep.subr.mxu0 0.0
    %630 = vmatpush1.msra.mxu0 0.0
    %631 = vmatprep.subr.mxu0 0.0
    %632 = vmatpush1.msra.mxu0 0.0
    %633 = vmatprep.subr.mxu0 0.0
    %634 = vmatpush1.msra.mxu0 0.0
    %635 = vmatprep.subr.mxu0 0.0
    %636 = vmatpush1.msra.mxu0 0.0
    %637 = vmatprep.mubr.f32.mxu0 0.0
    %638 = vmatmul.mubr.f32.gmra.mrb[0].mxu0 %v167
    %v639 = vpop.f32.mrb[0].mxu0
    %v640 = vadd.f32 0.0, %v639
    %v641 = vpop.f32.mrb[0].mxu0
    %v642 = vadd.f32 0.0, %v641
    %643 = vdwg.mxu0
    %644 = vmatprep.subr.mxu0 %v254
    %645 = vmatpush1.msra.mxu0 %v253
    %646 = vmatprep.subr.mxu0 %v258
    %647 = vmatpush1.msra.mxu0 %v257
    %648 = vmatprep.subr.mxu0 %v262
    %649 = vmatpush1.msra.mxu0 %v261
    %650 = vmatprep.subr.mxu0 %v266
    %651 = vmatpush1.msra.mxu0 %v265
    %652 = vmatprep.subr.mxu0 %v270
    %653 = vmatpush1.msra.mxu0 %v269
    %654 = vmatprep.subr.mxu0 %v274
    %655 = vmatpush1.msra.mxu0 %v273
    %656 = vmatprep.subr.mxu0 %v278
    %657 = vmatpush1.msra.mxu0 %v277
    %658 = vmatprep.subr.mxu0 %v282
    %659 = vmatpush1.msra.mxu0 %v281
    %660 = vmatprep.subr.mxu0 %v286
    %661 = vmatpush1.msra.mxu0 %v285
    %662 = vmatprep.subr.mxu0 %v290
    %663 = vmatpush1.msra.mxu0 %v289
    %664 = vmatprep.subr.mxu0 %v294
    %665 = vmatpush1.msra.mxu0 %v293
    %666 = vmatprep.subr.mxu0 %v298
    %667 = vmatpush1.msra.mxu0 %v297
    %668 = vmatprep.subr.mxu0 %v302
    %669 = vmatpush1.msra.mxu0 %v301
    %670 = vmatprep.subr.mxu0 %v306
    %671 = vmatpush1.msra.mxu0 %v305
    %672 = vmatprep.subr.mxu0 %v310
    %673 = vmatpush1.msra.mxu0 %v309
    %674 = vmatprep.subr.mxu0 %v314
    %675 = vmatpush1.msra.mxu0 %v313
    %676 = vmatprep.subr.mxu0 0.0
    %677 = vmatpush1.msra.mxu0 0.0
    %678 = vmatprep.subr.mxu0 0.0
    %679 = vmatpush1.msra.mxu0 0.0
    %680 = vmatprep.subr.mxu0 0.0
    %681 = vmatpush1.msra.mxu0 0.0
    %682 = vmatprep.subr.mxu0 0.0
    %683 = vmatpush1.msra.mxu0 0.0
    %684 = vmatprep.subr.mxu0 0.0
    %685 = vmatpush1.msra.mxu0 0.0
    %686 = vmatprep.subr.mxu0 0.0
    %687 = vmatpush1.msra.mxu0 0.0
    %688 = vmatprep.subr.mxu0 0.0
    %689 = vmatpush1.msra.mxu0 0.0
    %690 = vmatprep.subr.mxu0 0.0
    %691 = vmatpush1.msra.mxu0 0.0
    %692 = vmatprep.subr.mxu0 0.0
    %693 = vmatpush1.msra.mxu0 0.0
    %694 = vmatprep.subr.mxu0 0.0
    %695 = vmatpush1.msra.mxu0 0.0
    %696 = vmatprep.subr.mxu0 0.0
    %697 = vmatpush1.msra.mxu0 0.0
    %698 = vmatprep.subr.mxu0 0.0
    %699 = vmatpush1.msra.mxu0 0.0
    %700 = vmatprep.subr.mxu0 0.0
    %701 = vmatpush1.msra.mxu0 0.0
    %702 = vmatprep.subr.mxu0 0.0
    %703 = vmatpush1.msra.mxu0 0.0
    %704 = vmatprep.subr.mxu0 0.0
    %705 = vmatpush1.msra.mxu0 0.0
    %706 = vmatprep.subr.mxu0 0.0
    %707 = vmatpush1.msra.mxu0 0.0
    %708 = vmatprep.mubr.f32.mxu0 0.0
    %709 = vmatmul.mubr.f32.gmra.mrb[0].mxu0 %v167
    %v710 = vpop.f32.mrb[0].mxu0
    %v711 = vadd.f32 0.0, %v710
    %v712 = vpop.f32.mrb[0].mxu0
    %v713 = vadd.f32 0.0, %v712
    %714 = vdwg.mxu0
    %v715 = vadd.f32 %v498, %v640
    %v716 = vadd.f32 %v500, %v642
    %v717 = vadd.f32 %v569, %v711
    %v718 = vadd.f32 %v571, %v713
    %v720 = vlaneseq
    %v721 = vshrl.u32 %v720, 7
    %v722 = vsub.s32 0, %v721
    %v723 = vrot.slane %v315, %v722
    %v724 = vlaneseq
    %v725 = vshrl.u32 %v724, 7
    %v726 = vsub.s32 1, %v725
    %v727 = vrot.slane %v315, %v726
    %v728 = vlaneseq
    %v729 = vshrl.u32 %v728, 7
    %v730 = vsub.s32 2, %v729
    %v731 = vrot.slane %v315, %v730
    %v732 = vlaneseq
    %v733 = vshrl.u32 %v732, 7
    %v734 = vsub.s32 3, %v733
    %v735 = vrot.slane %v315, %v734
    %v740 = vadd.f32 %v715, %v723
    %v741 = vadd.f32 %v716, %v727
    %v742 = vadd.f32 %v717, %v731
    %v743 = vadd.f32 %v718, %v735
    %v744 = vxor.u32 %v740, 2147483648
    %v745 = vmul.f32 %v744, 1.442695
    %v746 = vpow.pop %v745
    %v747 = vadd.f32 %v746, 1.0
    %v748 = vrcp.pop %v747
    %v749 = vmul.f32 1.0, %v748
    %v750 = vxor.u32 %v741, 2147483648
    %v751 = vmul.f32 %v750, 1.442695
    %v752 = vpow.pop %v751
    %v753 = vadd.f32 %v752, 1.0
    %v754 = vrcp.pop %v753
    %v755 = vmul.f32 1.0, %v754
    %v756 = vtanh.pop %v742
    %v757 = vxor.u32 %v743, 2147483648
    %v758 = vmul.f32 %v757, 1.442695
    %v759 = vpow.pop %v758
    %v760 = vadd.f32 %v759, 1.0
    %v761 = vrcp.pop %v760
    %v762 = vmul.f32 1.0, %v761
    %v763 = vmul.f32 %v755, %v168
    %v764 = vmul.f32 %v749, %v756
    %v765 = vadd.f32 %v763, %v764
    %v766 = vtanh.pop %v765
    %v767 = vmul.f32 %v762, %v766
    %v769 = vlaneseq
    %v770 = vshrl.u32 %v769, 7
    %v771 = vsub.s32 0, %v770
    %v772 = vrot.slane %v332, %v771
    %774 = vmatprep.subr.mxu0 0.0
    %775 = vmatpush1.msra.mxu0 %v316
    %776 = vmatprep.subr.mxu0 0.0
    %777 = vmatpush1.msra.mxu0 %v317
    %778 = vmatprep.subr.mxu0 0.0
    %779 = vmatpush1.msra.mxu0 %v318
    %780 = vmatprep.subr.mxu0 0.0
    %781 = vmatpush1.msra.mxu0 %v319
    %782 = vmatprep.subr.mxu0 0.0
    %783 = vmatpush1.msra.mxu0 %v320
    %784 = vmatprep.subr.mxu0 0.0
    %785 = vmatpush1.msra.mxu0 %v321
    %786 = vmatprep.subr.mxu0 0.0
    %787 = vmatpush1.msra.mxu0 %v322
    %788 = vmatprep.subr.mxu0 0.0
    %789 = vmatpush1.msra.mxu0 %v323
    %790 = vmatprep.subr.mxu0 0.0
    %791 = vmatpush1.msra.mxu0 %v324
    %792 = vmatprep.subr.mxu0 0.0
    %793 = vmatpush1.msra.mxu0 %v325
    %794 = vmatprep.subr.mxu0 0.0
    %795 = vmatpush1.msra.mxu0 %v326
    %796 = vmatprep.subr.mxu0 0.0
    %797 = vmatpush1.msra.mxu0 %v327
    %798 = vmatprep.subr.mxu0 0.0
    %799 = vmatpush1.msra.mxu0 %v328
    %800 = vmatprep.subr.mxu0 0.0
    %801 = vmatpush1.msra.mxu0 %v329
    %802 = vmatprep.subr.mxu0 0.0
    %803 = vmatpush1.msra.mxu0 %v330
    %804 = vmatprep.subr.mxu0 0.0
    %805 = vmatpush1.msra.mxu0 %v331
    %806 = vmatprep.subr.mxu0 0.0
    %807 = vmatpush1.msra.mxu0 0.0
    %808 = vmatprep.subr.mxu0 0.0
    %809 = vmatpush1.msra.mxu0 0.0
    %810 = vmatprep.subr.mxu0 0.0
    %811 = vmatpush1.msra.mxu0 0.0
    %812 = vmatprep.subr.mxu0 0.0
    %813 = vmatpush1.msra.mxu0 0.0
    %814 = vmatprep.subr.mxu0 0.0
    %815 = vmatpush1.msra.mxu0 0.0
    %816 = vmatprep.subr.mxu0 0.0
    %817 = vmatpush1.msra.mxu0 0.0
    %818 = vmatprep.subr.mxu0 0.0
    %819 = vmatpush1.msra.mxu0 0.0
    %820 = vmatprep.subr.mxu0 0.0
    %821 = vmatpush1.msra.mxu0 0.0
    %822 = vmatprep.subr.mxu0 0.0
    %823 = vmatpush1.msra.mxu0 0.0
    %824 = vmatprep.subr.mxu0 0.0
    %825 = vmatpush1.msra.mxu0 0.0
    %826 = vmatprep.subr.mxu0 0.0
    %827 = vmatpush1.msra.mxu0 0.0
    %828 = vmatprep.subr.mxu0 0.0
    %829 = vmatpush1.msra.mxu0 0.0
    %830 = vmatprep.subr.mxu0 0.0
    %831 = vmatpush1.msra.mxu0 0.0
    %832 = vmatprep.subr.mxu0 0.0
    %833 = vmatpush1.msra.mxu0 0.0
    %834 = vmatprep.subr.mxu0 0.0
    %835 = vmatpush1.msra.mxu0 0.0
    %836 = vmatprep.subr.mxu0 0.0
    %837 = vmatpush1.msra.mxu0 0.0
    %838 = vmatprep.mubr.f32.mxu0 0.0
    %839 = vmatmul.mubr.f32.gmra.mrb[0].mxu0 %v767
    %v840 = vpop.f32.mrb[0].mxu0
    %v841 = vadd.f32 %v772, %v840
    %v842 = vpop.f32.mrb[0].mxu0
    %843 = vdwg.mxu0
    %v844 = vld [vmem:[%s2] sm:$0xff]
    %v845 = vld [vmem:[#allocation4] sm:$0xff]
    %v846 = vld [vmem:[#allocation7] sm:$0xff]
    %s847 = scalar_lea.vmem [#allocation9], 128
    %v848 = vld [vmem:[%s847] sm:$0xff]
    %v849 = vld [vmem:[%s847 + $0x8] sm:$0xff]
    %v850 = vld [vmem:[%s847 + $0x10] sm:$0xff]
    %v851 = vld [vmem:[%s847 + $0x18] sm:$0xff]
    %v852 = vld [vmem:[%s847 + $0x20] sm:$0xff]
    %v853 = vld [vmem:[%s847 + $0x28] sm:$0xff]
    %v854 = vld [vmem:[%s847 + $0x30] sm:$0xff]
    %v855 = vld [vmem:[%s847 + $0x38] sm:$0xff]
    %v856 = vld [vmem:[%s847 + $0x40] sm:$0xff]
    %v857 = vld [vmem:[%s847 + $0x48] sm:$0xff]
    %v858 = vld [vmem:[%s847 + $0x50] sm:$0xff]
    %v859 = vld [vmem:[%s847 + $0x58] sm:$0xff]
    %v860 = vld [vmem:[%s847 + $0x60] sm:$0xff]
    %v861 = vld [vmem:[%s847 + $0x68] sm:$0xff]
    %v862 = vld [vmem:[%s847 + $0x70] sm:$0xff]
    %v863 = vld [vmem:[%s847 + $0x78] sm:$0xff]
    %s864 = scalar_lea.vmem %s9, 1
    %v865 = vld [vmem:[%s864] sm:$0x1]
    %s866 = scalar_lea.vmem [#allocation10], 512
    %v867 = vld [vmem:[%s866] sm:$0xff]
    %v868 = vld [vmem:[%s866 + $0x8] sm:$0xff]
    %v869 = vld [vmem:[%s866 + $0x10] sm:$0xff]
    %v870 = vld [vmem:[%s866 + $0x18] sm:$0xff]
    %v871 = vld [vmem:[%s866 + $0x20] sm:$0xff]
    %v872 = vld [vmem:[%s866 + $0x28] sm:$0xff]
    %v873 = vld [vmem:[%s866 + $0x30] sm:$0xff]
    %v874 = vld [vmem:[%s866 + $0x38] sm:$0xff]
    %v875 = vld [vmem:[%s866 + $0x40] sm:$0xff]
    %v876 = vld [vmem:[%s866 + $0x48] sm:$0xff]
    %v877 = vld [vmem:[%s866 + $0x50] sm:$0xff]
    %v878 = vld [vmem:[%s866 + $0x58] sm:$0xff]
    %v879 = vld [vmem:[%s866 + $0x60] sm:$0xff]
    %v880 = vld [vmem:[%s866 + $0x68] sm:$0xff]
    %v881 = vld [vmem:[%s866 + $0x70] sm:$0xff]
    %v882 = vld [vmem:[%s866 + $0x78] sm:$0xff]
    %v883 = vld [vmem:[%s866 + $0x80] sm:$0xff]
    %v884 = vld [vmem:[%s866 + $0x88] sm:$0xff]
    %v885 = vld [vmem:[%s866 + $0x90] sm:$0xff]
    %v886 = vld [vmem:[%s866 + $0x98] sm:$0xff]
    %v887 = vld [vmem:[%s866 + $0xa0] sm:$0xff]
    %v888 = vld [vmem:[%s866 + $0xa8] sm:$0xff]
    %v889 = vld [vmem:[%s866 + $0xb0] sm:$0xff]
    %v890 = vld [vmem:[%s866 + $0xb8] sm:$0xff]
    %v891 = vld [vmem:[%s866 + $0xc0] sm:$0xff]
    %v892 = vld [vmem:[%s866 + $0xc8] sm:$0xff]
    %v893 = vld [vmem:[%s866 + $0xd0] sm:$0xff]
    %v894 = vld [vmem:[%s866 + $0xd8] sm:$0xff]
    %v895 = vld [vmem:[%s866 + $0xe0] sm:$0xff]
    %v896 = vld [vmem:[%s866 + $0xe8] sm:$0xff]
    %v897 = vld [vmem:[%s866 + $0xf0] sm:$0xff]
    %v898 = vld [vmem:[%s866 + $0xf8] sm:$0xff]
    %v899 = vld [vmem:[%s866 + $0x100] sm:$0xff]
    %v900 = vld [vmem:[%s866 + $0x108] sm:$0xff]
    %v901 = vld [vmem:[%s866 + $0x110] sm:$0xff]
    %v902 = vld [vmem:[%s866 + $0x118] sm:$0xff]
    %v903 = vld [vmem:[%s866 + $0x120] sm:$0xff]
    %v904 = vld [vmem:[%s866 + $0x128] sm:$0xff]
    %v905 = vld [vmem:[%s866 + $0x130] sm:$0xff]
    %v906 = vld [vmem:[%s866 + $0x138] sm:$0xff]
    %v907 = vld [vmem:[%s866 + $0x140] sm:$0xff]
    %v908 = vld [vmem:[%s866 + $0x148] sm:$0xff]
    %v909 = vld [vmem:[%s866 + $0x150] sm:$0xff]
    %v910 = vld [vmem:[%s866 + $0x158] sm:$0xff]
    %v911 = vld [vmem:[%s866 + $0x160] sm:$0xff]
    %v912 = vld [vmem:[%s866 + $0x168] sm:$0xff]
    %v913 = vld [vmem:[%s866 + $0x170] sm:$0xff]
    %v914 = vld [vmem:[%s866 + $0x178] sm:$0xff]
    %v915 = vld [vmem:[%s866 + $0x180] sm:$0xff]
    %v916 = vld [vmem:[%s866 + $0x188] sm:$0xff]
    %v917 = vld [vmem:[%s866 + $0x190] sm:$0xff]
    %v918 = vld [vmem:[%s866 + $0x198] sm:$0xff]
    %v919 = vld [vmem:[%s866 + $0x1a0] sm:$0xff]
    %v920 = vld [vmem:[%s866 + $0x1a8] sm:$0xff]
    %v921 = vld [vmem:[%s866 + $0x1b0] sm:$0xff]
    %v922 = vld [vmem:[%s866 + $0x1b8] sm:$0xff]
    %v923 = vld [vmem:[%s866 + $0x1c0] sm:$0xff]
    %v924 = vld [vmem:[%s866 + $0x1c8] sm:$0xff]
    %v925 = vld [vmem:[%s866 + $0x1d0] sm:$0xff]
    %v926 = vld [vmem:[%s866 + $0x1d8] sm:$0xff]
    %v927 = vld [vmem:[%s866 + $0x1e0] sm:$0xff]
    %v928 = vld [vmem:[%s866 + $0x1e8] sm:$0xff]
    %v929 = vld [vmem:[%s866 + $0x1f0] sm:$0xff]
    %v930 = vld [vmem:[%s866 + $0x1f8] sm:$0xff]
    %s931 = scalar_lea.vmem %s11, 4
    %v932 = vld [vmem:[%s931] sm:$0xf]
    %s933 = scalar_lea.vmem [#allocation12], 512
    %v934 = vld [vmem:[%s933] sm:$0xff]
    %v935 = vld [vmem:[%s933 + $0x8] sm:$0xff]
    %v936 = vld [vmem:[%s933 + $0x10] sm:$0xff]
    %v937 = vld [vmem:[%s933 + $0x18] sm:$0xff]
    %v938 = vld [vmem:[%s933 + $0x20] sm:$0xff]
    %v939 = vld [vmem:[%s933 + $0x28] sm:$0xff]
    %v940 = vld [vmem:[%s933 + $0x30] sm:$0xff]
    %v941 = vld [vmem:[%s933 + $0x38] sm:$0xff]
    %v942 = vld [vmem:[%s933 + $0x40] sm:$0xff]
    %v943 = vld [vmem:[%s933 + $0x48] sm:$0xff]
    %v944 = vld [vmem:[%s933 + $0x50] sm:$0xff]
    %v945 = vld [vmem:[%s933 + $0x58] sm:$0xff]
    %v946 = vld [vmem:[%s933 + $0x60] sm:$0xff]
    %v947 = vld [vmem:[%s933 + $0x68] sm:$0xff]
    %v948 = vld [vmem:[%s933 + $0x70] sm:$0xff]
    %v949 = vld [vmem:[%s933 + $0x78] sm:$0xff]
    %v950 = vld [vmem:[%s933 + $0x80] sm:$0xff]
    %v951 = vld [vmem:[%s933 + $0x88] sm:$0xff]
    %v952 = vld [vmem:[%s933 + $0x90] sm:$0xff]
    %v953 = vld [vmem:[%s933 + $0x98] sm:$0xff]
    %v954 = vld [vmem:[%s933 + $0xa0] sm:$0xff]
    %v955 = vld [vmem:[%s933 + $0xa8] sm:$0xff]
    %v956 = vld [vmem:[%s933 + $0xb0] sm:$0xff]
    %v957 = vld [vmem:[%s933 + $0xb8] sm:$0xff]
    %v958 = vld [vmem:[%s933 + $0xc0] sm:$0xff]
    %v959 = vld [vmem:[%s933 + $0xc8] sm:$0xff]
    %v960 = vld [vmem:[%s933 + $0xd0] sm:$0xff]
    %v961 = vld [vmem:[%s933 + $0xd8] sm:$0xff]
    %v962 = vld [vmem:[%s933 + $0xe0] sm:$0xff]
    %v963 = vld [vmem:[%s933 + $0xe8] sm:$0xff]
    %v964 = vld [vmem:[%s933 + $0xf0] sm:$0xff]
    %v965 = vld [vmem:[%s933 + $0xf8] sm:$0xff]
    %v966 = vld [vmem:[%s933 + $0x100] sm:$0xff]
    %v967 = vld [vmem:[%s933 + $0x108] sm:$0xff]
    %v968 = vld [vmem:[%s933 + $0x110] sm:$0xff]
    %v969 = vld [vmem:[%s933 + $0x118] sm:$0xff]
    %v970 = vld [vmem:[%s933 + $0x120] sm:$0xff]
    %v971 = vld [vmem:[%s933 + $0x128] sm:$0xff]
    %v972 = vld [vmem:[%s933 + $0x130] sm:$0xff]
    %v973 = vld [vmem:[%s933 + $0x138] sm:$0xff]
    %v974 = vld [vmem:[%s933 + $0x140] sm:$0xff]
    %v975 = vld [vmem:[%s933 + $0x148] sm:$0xff]
    %v976 = vld [vmem:[%s933 + $0x150] sm:$0xff]
    %v977 = vld [vmem:[%s933 + $0x158] sm:$0xff]
    %v978 = vld [vmem:[%s933 + $0x160] sm:$0xff]
    %v979 = vld [vmem:[%s933 + $0x168] sm:$0xff]
    %v980 = vld [vmem:[%s933 + $0x170] sm:$0xff]
    %v981 = vld [vmem:[%s933 + $0x178] sm:$0xff]
    %v982 = vld [vmem:[%s933 + $0x180] sm:$0xff]
    %v983 = vld [vmem:[%s933 + $0x188] sm:$0xff]
    %v984 = vld [vmem:[%s933 + $0x190] sm:$0xff]
    %v985 = vld [vmem:[%s933 + $0x198] sm:$0xff]
    %v986 = vld [vmem:[%s933 + $0x1a0] sm:$0xff]
    %v987 = vld [vmem:[%s933 + $0x1a8] sm:$0xff]
    %v988 = vld [vmem:[%s933 + $0x1b0] sm:$0xff]
    %v989 = vld [vmem:[%s933 + $0x1b8] sm:$0xff]
    %v990 = vld [vmem:[%s933 + $0x1c0] sm:$0xff]
    %v991 = vld [vmem:[%s933 + $0x1c8] sm:$0xff]
    %v992 = vld [vmem:[%s933 + $0x1d0] sm:$0xff]
    %v993 = vld [vmem:[%s933 + $0x1d8] sm:$0xff]
    %v994 = vld [vmem:[%s933 + $0x1e0] sm:$0xff]
    %v995 = vld [vmem:[%s933 + $0x1e8] sm:$0xff]
    %v996 = vld [vmem:[%s933 + $0x1f0] sm:$0xff]
    %v997 = vld [vmem:[%s933 + $0x1f8] sm:$0xff]
    %s998 = scalar_lea.vmem %s13, 4
    %v999 = vld [vmem:[%s998] sm:$0xf]
    %s1000 = scalar_lea.vmem [#allocation13], 128
    %v1001 = vld [vmem:[%s1000] sm:$0xff]
    %v1002 = vld [vmem:[%s1000 + $0x8] sm:$0xff]
    %v1003 = vld [vmem:[%s1000 + $0x10] sm:$0xff]
    %v1004 = vld [vmem:[%s1000 + $0x18] sm:$0xff]
    %v1005 = vld [vmem:[%s1000 + $0x20] sm:$0xff]
    %v1006 = vld [vmem:[%s1000 + $0x28] sm:$0xff]
    %v1007 = vld [vmem:[%s1000 + $0x30] sm:$0xff]
    %v1008 = vld [vmem:[%s1000 + $0x38] sm:$0xff]
    %v1009 = vld [vmem:[%s1000 + $0x40] sm:$0xff]
    %v1010 = vld [vmem:[%s1000 + $0x48] sm:$0xff]
    %v1011 = vld [vmem:[%s1000 + $0x50] sm:$0xff]
    %v1012 = vld [vmem:[%s1000 + $0x58] sm:$0xff]
    %v1013 = vld [vmem:[%s1000 + $0x60] sm:$0xff]
    %v1014 = vld [vmem:[%s1000 + $0x68] sm:$0xff]
    %v1015 = vld [vmem:[%s1000 + $0x70] sm:$0xff]
    %v1016 = vld [vmem:[%s1000 + $0x78] sm:$0xff]
    %s1017 = scalar_lea.vmem %s15, 1
    %v1018 = vld [vmem:[%s1017] sm:$0x1]
    %v1020 = vlaneseq
    %v1021 = vshrl.u32 %v1020, 7
    %v1022 = vsub.s32 0, %v1021
    %v1023 = vrot.slane %v865, %v1022
    %1025 = vmatprep.subr.mxu0 0.0
    %1026 = vmatpush1.msra.mxu0 %v848
    %1027 = vmatprep.subr.mxu0 0.0
    %1028 = vmatpush1.msra.mxu0 %v849
    %1029 = vmatprep.subr.mxu0 0.0
    %1030 = vmatpush1.msra.mxu0 %v850
    %1031 = vmatprep.subr.mxu0 0.0
    %1032 = vmatpush1.msra.mxu0 %v851
    %1033 = vmatprep.subr.mxu0 0.0
    %1034 = vmatpush1.msra.mxu0 %v852
    %1035 = vmatprep.subr.mxu0 0.0
    %1036 = vmatpush1.msra.mxu0 %v853
    %1037 = vmatprep.subr.mxu0 0.0
    %1038 = vmatpush1.msra.mxu0 %v854
    %1039 = vmatprep.subr.mxu0 0.0
    %1040 = vmatpush1.msra.mxu0 %v855
    %1041 = vmatprep.subr.mxu0 0.0
    %1042 = vmatpush1.msra.mxu0 %v856
    %1043 = vmatprep.subr.mxu0 0.0
    %1044 = vmatpush1.msra.mxu0 %v857
    %1045 = vmatprep.subr.mxu0 0.0
    %1046 = vmatpush1.msra.mxu0 %v858
    %1047 = vmatprep.subr.mxu0 0.0
    %1048 = vmatpush1.msra.mxu0 %v859
    %1049 = vmatprep.subr.mxu0 0.0
    %1050 = vmatpush1.msra.mxu0 %v860
    %1051 = vmatprep.subr.mxu0 0.0
    %1052 = vmatpush1.msra.mxu0 %v861
    %1053 = vmatprep.subr.mxu0 0.0
    %1054 = vmatpush1.msra.mxu0 %v862
    %1055 = vmatprep.subr.mxu0 0.0
    %1056 = vmatpush1.msra.mxu0 %v863
    %1057 = vmatprep.subr.mxu0 0.0
    %1058 = vmatpush1.msra.mxu0 0.0
    %1059 = vmatprep.subr.mxu0 0.0
    %1060 = vmatpush1.msra.mxu0 0.0
    %1061 = vmatprep.subr.mxu0 0.0
    %1062 = vmatpush1.msra.mxu0 0.0
    %1063 = vmatprep.subr.mxu0 0.0
    %1064 = vmatpush1.msra.mxu0 0.0
    %1065 = vmatprep.subr.mxu0 0.0
    %1066 = vmatpush1.msra.mxu0 0.0
    %1067 = vmatprep.subr.mxu0 0.0
    %1068 = vmatpush1.msra.mxu0 0.0
    %1069 = vmatprep.subr.mxu0 0.0
    %1070 = vmatpush1.msra.mxu0 0.0
    %1071 = vmatprep.subr.mxu0 0.0
    %1072 = vmatpush1.msra.mxu0 0.0
    %1073 = vmatprep.subr.mxu0 0.0
    %1074 = vmatpush1.msra.mxu0 0.0
    %1075 = vmatprep.subr.mxu0 0.0
    %1076 = vmatpush1.msra.mxu0 0.0
    %1077 = vmatprep.subr.mxu0 0.0
    %1078 = vmatpush1.msra.mxu0 0.0
    %1079 = vmatprep.subr.mxu0 0.0
    %1080 = vmatpush1.msra.mxu0 0.0
    %1081 = vmatprep.subr.mxu0 0.0
    %1082 = vmatpush1.msra.mxu0 0.0
    %1083 = vmatprep.subr.mxu0 0.0
    %1084 = vmatpush1.msra.mxu0 0.0
    %1085 = vmatprep.subr.mxu0 0.0
    %1086 = vmatpush1.msra.mxu0 0.0
    %1087 = vmatprep.subr.mxu0 0.0
    %1088 = vmatpush1.msra.mxu0 0.0
    %1089 = vmatprep.mubr.f32.mxu0 0.0
    %1090 = vmatmul.mubr.f32.gmra.mrb[0].mxu0 %v844
    %v1091 = vpop.f32.mrb[0].mxu0
    %v1092 = vadd.f32 %v1023, %v1091
    %v1093 = vpop.f32.mrb[0].mxu0
    %1094 = vdwg.mxu0
    %v1095 = vmax.f32 %v1092, 0.0
    %v1097 = vlaneseq
    %v1098 = vshrl.u32 %v1097, 7
    %v1099 = vsub.s32 0, %v1098
    %v1100 = vrot.slane %v932, %v1099
    %v1101 = vlaneseq
    %v1102 = vshrl.u32 %v1101, 7
    %v1103 = vsub.s32 1, %v1102
    %v1104 = vrot.slane %v932, %v1103
    %v1105 = vlaneseq
    %v1106 = vshrl.u32 %v1105, 7
    %v1107 = vsub.s32 2, %v1106
    %v1108 = vrot.slane %v932, %v1107
    %v1109 = vlaneseq
    %v1110 = vshrl.u32 %v1109, 7
    %v1111 = vsub.s32 3, %v1110
    %v1112 = vrot.slane %v932, %v1111
    %1117 = vmatprep.subr.mxu0 %v868
    %1118 = vmatpush1.msra.mxu0 %v867
    %1119 = vmatprep.subr.mxu0 %v872
    %1120 = vmatpush1.msra.mxu0 %v871
    %1121 = vmatprep.subr.mxu0 %v876
    %1122 = vmatpush1.msra.mxu0 %v875
    %1123 = vmatprep.subr.mxu0 %v880
    %1124 = vmatpush1.msra.mxu0 %v879
    %1125 = vmatprep.subr.mxu0 %v884
    %1126 = vmatpush1.msra.mxu0 %v883
    %1127 = vmatprep.subr.mxu0 %v888
    %1128 = vmatpush1.msra.mxu0 %v887
    %1129 = vmatprep.subr.mxu0 %v892
    %1130 = vmatpush1.msra.mxu0 %v891
    %1131 = vmatprep.subr.mxu0 %v896
    %1132 = vmatpush1.msra.mxu0 %v895
    %1133 = vmatprep.subr.mxu0 %v900
    %1134 = vmatpush1.msra.mxu0 %v899
    %1135 = vmatprep.subr.mxu0 %v904
    %1136 = vmatpush1.msra.mxu0 %v903
    %1137 = vmatprep.subr.mxu0 %v908
    %1138 = vmatpush1.msra.mxu0 %v907
    %1139 = vmatprep.subr.mxu0 %v912
    %1140 = vmatpush1.msra.mxu0 %v911
    %1141 = vmatprep.subr.mxu0 %v916
    %1142 = vmatpush1.msra.mxu0 %v915
    %1143 = vmatprep.subr.mxu0 %v920
    %1144 = vmatpush1.msra.mxu0 %v919
    %1145 = vmatprep.subr.mxu0 %v924
    %1146 = vmatpush1.msra.mxu0 %v923
    %1147 = vmatprep.subr.mxu0 %v928
    %1148 = vmatpush1.msra.mxu0 %v927
    %1149 = vmatprep.subr.mxu0 0.0
    %1150 = vmatpush1.msra.mxu0 0.0
    %1151 = vmatprep.subr.mxu0 0.0
    %1152 = vmatpush1.msra.mxu0 0.0
    %1153 = vmatprep.subr.mxu0 0.0
    %1154 = vmatpush1.msra.mxu0 0.0
    %1155 = vmatprep.subr.mxu0 0.0
    %1156 = vmatpush1.msra.mxu0 0.0
    %1157 = vmatprep.subr.mxu0 0.0
    %1158 = vmatpush1.msra.mxu0 0.0
    %1159 = vmatprep.subr.mxu0 0.0
    %1160 = vmatpush1.msra.mxu0 0.0
    %1161 = vmatprep.subr.mxu0 0.0
    %1162 = vmatpush1.msra.mxu0 0.0
    %1163 = vmatprep.subr.mxu0 0.0
    %1164 = vmatpush1.msra.mxu0 0.0
    %1165 = vmatprep.subr.mxu0 0.0
    %1166 = vmatpush1.msra.mxu0 0.0
    %1167 = vmatprep.subr.mxu0 0.0
    %1168 = vmatpush1.msra.mxu0 0.0
    %1169 = vmatprep.subr.mxu0 0.0
    %1170 = vmatpush1.msra.mxu0 0.0
    %1171 = vmatprep.subr.mxu0 0.0
    %1172 = vmatpush1.msra.mxu0 0.0
    %1173 = vmatprep.subr.mxu0 0.0
    %1174 = vmatpush1.msra.mxu0 0.0
    %1175 = vmatprep.subr.mxu0 0.0
    %1176 = vmatpush1.msra.mxu0 0.0
    %1177 = vmatprep.subr.mxu0 0.0
    %1178 = vmatpush1.msra.mxu0 0.0
    %1179 = vmatprep.subr.mxu0 0.0
    %1180 = vmatpush1.msra.mxu0 0.0
    %1181 = vmatprep.mubr.f32.mxu0 0.0
    %1182 = vmatmul.mubr.f32.gmra.mrb[0].mxu0 %v1095
    %v1183 = vpop.f32.mrb[0].mxu0
    %v1184 = vadd.f32 %v1100, %v1183
    %v1185 = vpop.f32.mrb[0].mxu0
    %v1186 = vadd.f32 %v1104, %v1185
    %1187 = vdwg.mxu0
    %1188 = vmatprep.subr.mxu0 %v870
    %1189 = vmatpush1.msra.mxu0 %v869
    %1190 = vmatprep.subr.mxu0 %v874
    %1191 = vmatpush1.msra.mxu0 %v873
    %1192 = vmatprep.subr.mxu0 %v878
    %1193 = vmatpush1.msra.mxu0 %v877
    %1194 = vmatprep.subr.mxu0 %v882
    %1195 = vmatpush1.msra.mxu0 %v881
    %1196 = vmatprep.subr.mxu0 %v886
    %1197 = vmatpush1.msra.mxu0 %v885
    %1198 = vmatprep.subr.mxu0 %v890
    %1199 = vmatpush1.msra.mxu0 %v889
    %1200 = vmatprep.subr.mxu0 %v894
    %1201 = vmatpush1.msra.mxu0 %v893
    %1202 = vmatprep.subr.mxu0 %v898
    %1203 = vmatpush1.msra.mxu0 %v897
    %1204 = vmatprep.subr.mxu0 %v902
    %1205 = vmatpush1.msra.mxu0 %v901
    %1206 = vmatprep.subr.mxu0 %v906
    %1207 = vmatpush1.msra.mxu0 %v905
    %1208 = vmatprep.subr.mxu0 %v910
    %1209 = vmatpush1.msra.mxu0 %v909
    %1210 = vmatprep.subr.mxu0 %v914
    %1211 = vmatpush1.msra.mxu0 %v913
    %1212 = vmatprep.subr.mxu0 %v918
    %1213 = vmatpush1.msra.mxu0 %v917
    %1214 = vmatprep.subr.mxu0 %v922
    %1215 = vmatpush1.msra.mxu0 %v921
    %1216 = vmatprep.subr.mxu0 %v926
    %1217 = vmatpush1.msra.mxu0 %v925
    %1218 = vmatprep.subr.mxu0 %v930
    %1219 = vmatpush1.msra.mxu0 %v929
    %1220 = vmatprep.subr.mxu0 0.0
    %1221 = vmatpush1.msra.mxu0 0.0
    %1222 = vmatprep.subr.mxu0 0.0
    %1223 = vmatpush1.msra.mxu0 0.0
    %1224 = vmatprep.subr.mxu0 0.0
    %1225 = vmatpush1.msra.mxu0 0.0
    %1226 = vmatprep.subr.mxu0 0.0
    %1227 = vmatpush1.msra.mxu0 0.0
    %1228 = vmatprep.subr.mxu0 0.0
    %1229 = vmatpush1.msra.mxu0 0.0
    %1230 = vmatprep.subr.mxu0 0.0
    %1231 = vmatpush1.msra.mxu0 0.0
    %1232 = vmatprep.subr.mxu0 0.0
    %1233 = vmatpush1.msra.mxu0 0.0
    %1234 = vmatprep.subr.mxu0 0.0
    %1235 = vmatpush1.msra.mxu0 0.0
    %1236 = vmatprep.subr.mxu0 0.0
    %1237 = vmatpush1.msra.mxu0 0.0
    %1238 = vmatprep.subr.mxu0 0.0
    %1239 = vmatpush1.msra.mxu0 0.0
    %1240 = vmatprep.subr.mxu0 0.0
    %1241 = vmatpush1.msra.mxu0 0.0
    %1242 = vmatprep.subr.mxu0 0.0
    %1243 = vmatpush1.msra.mxu0 0.0
    %1244 = vmatprep.subr.mxu0 0.0
    %1245 = vmatpush1.msra.mxu0 0.0
    %1246 = vmatprep.subr.mxu0 0.0
    %1247 = vmatpush1.msra.mxu0 0.0
    %1248 = vmatprep.subr.mxu0 0.0
    %1249 = vmatpush1.msra.mxu0 0.0
    %1250 = vmatprep.subr.mxu0 0.0
    %1251 = vmatpush1.msra.mxu0 0.0
    %1252 = vmatprep.mubr.f32.mxu0 0.0
    %1253 = vmatmul.mubr.f32.gmra.mrb[0].mxu0 %v1095
    %v1254 = vpop.f32.mrb[0].mxu0
    %v1255 = vadd.f32 %v1108, %v1254
    %v1256 = vpop.f32.mrb[0].mxu0
    %v1257 = vadd.f32 %v1112, %v1256
    %1258 = vdwg.mxu0
    %1259 = vmatprep.subr.mxu0 %v935
    %1260 = vmatpush1.msra.mxu0 %v934
    %1261 = vmatprep.subr.mxu0 %v939
    %1262 = vmatpush1.msra.mxu0 %v938
    %1263 = vmatprep.subr.mxu0 %v943
    %1264 = vmatpush1.msra.mxu0 %v942
    %1265 = vmatprep.subr.mxu0 %v947
    %1266 = vmatpush1.msra.mxu0 %v946
    %1267 = vmatprep.subr.mxu0 %v951
    %1268 = vmatpush1.msra.mxu0 %v950
    %1269 = vmatprep.subr.mxu0 %v955
    %1270 = vmatpush1.msra.mxu0 %v954
    %1271 = vmatprep.subr.mxu0 %v959
    %1272 = vmatpush1.msra.mxu0 %v958
    %1273 = vmatprep.subr.mxu0 %v963
    %1274 = vmatpush1.msra.mxu0 %v962
    %1275 = vmatprep.subr.mxu0 %v967
    %1276 = vmatpush1.msra.mxu0 %v966
    %1277 = vmatprep.subr.mxu0 %v971
    %1278 = vmatpush1.msra.mxu0 %v970
    %1279 = vmatprep.subr.mxu0 %v975
    %1280 = vmatpush1.msra.mxu0 %v974
    %1281 = vmatprep.subr.mxu0 %v979
    %1282 = vmatpush1.msra.mxu0 %v978
    %1283 = vmatprep.subr.mxu0 %v983
    %1284 = vmatpush1.msra.mxu0 %v982
    %1285 = vmatprep.subr.mxu0 %v987
    %1286 = vmatpush1.msra.mxu0 %v986
    %1287 = vmatprep.subr.mxu0 %v991
    %1288 = vmatpush1.msra.mxu0 %v990
    %1289 = vmatprep.subr.mxu0 %v995
    %1290 = vmatpush1.msra.mxu0 %v994
    %1291 = vmatprep.subr.mxu0 0.0
    %1292 = vmatpush1.msra.mxu0 0.0
    %1293 = vmatprep.subr.mxu0 0.0
    %1294 = vmatpush1.msra.mxu0 0.0
    %1295 = vmatprep.subr.mxu0 0.0
    %1296 = vmatpush1.msra.mxu0 0.0
    %1297 = vmatprep.subr.mxu0 0.0
    %1298 = vmatpush1.msra.mxu0 0.0
    %1299 = vmatprep.subr.mxu0 0.0
    %1300 = vmatpush1.msra.mxu0 0.0
    %1301 = vmatprep.subr.mxu0 0.0
    %1302 = vmatpush1.msra.mxu0 0.0
    %1303 = vmatprep.subr.mxu0 0.0
    %1304 = vmatpush1.msra.mxu0 0.0
    %1305 = vmatprep.subr.mxu0 0.0
    %1306 = vmatpush1.msra.mxu0 0.0
    %1307 = vmatprep.subr.mxu0 0.0
    %1308 = vmatpush1.msra.mxu0 0.0
    %1309 = vmatprep.subr.mxu0 0.0
    %1310 = vmatpush1.msra.mxu0 0.0
    %1311 = vmatprep.subr.mxu0 0.0
    %1312 = vmatpush1.msra.mxu0 0.0
    %1313 = vmatprep.subr.mxu0 0.0
    %1314 = vmatpush1.msra.mxu0 0.0
    %1315 = vmatprep.subr.mxu0 0.0
    %1316 = vmatpush1.msra.mxu0 0.0
    %1317 = vmatprep.subr.mxu0 0.0
    %1318 = vmatpush1.msra.mxu0 0.0
    %1319 = vmatprep.subr.mxu0 0.0
    %1320 = vmatpush1.msra.mxu0 0.0
    %1321 = vmatprep.subr.mxu0 0.0
    %1322 = vmatpush1.msra.mxu0 0.0
    %1323 = vmatprep.mubr.f32.mxu0 0.0
    %1324 = vmatmul.mubr.f32.gmra.mrb[0].mxu0 %v845
    %v1325 = vpop.f32.mrb[0].mxu0
    %v1326 = vadd.f32 0.0, %v1325
    %v1327 = vpop.f32.mrb[0].mxu0
    %v1328 = vadd.f32 0.0, %v1327
    %1329 = vdwg.mxu0
    %1330 = vmatprep.subr.mxu0 %v937
    %1331 = vmatpush1.msra.mxu0 %v936
    %1332 = vmatprep.subr.mxu0 %v941
    %1333 = vmatpush1.msra.mxu0 %v940
    %1334 = vmatprep.subr.mxu0 %v945
    %1335 = vmatpush1.msra.mxu0 %v944
    %1336 = vmatprep.subr.mxu0 %v949
    %1337 = vmatpush1.msra.mxu0 %v948
    %1338 = vmatprep.subr.mxu0 %v953
    %1339 = vmatpush1.msra.mxu0 %v952
    %1340 = vmatprep.subr.mxu0 %v957
    %1341 = vmatpush1.msra.mxu0 %v956
    %1342 = vmatprep.subr.mxu0 %v961
    %1343 = vmatpush1.msra.mxu0 %v960
    %1344 = vmatprep.subr.mxu0 %v965
    %1345 = vmatpush1.msra.mxu0 %v964
    %1346 = vmatprep.subr.mxu0 %v969
    %1347 = vmatpush1.msra.mxu0 %v968
    %1348 = vmatprep.subr.mxu0 %v973
    %1349 = vmatpush1.msra.mxu0 %v972
    %1350 = vmatprep.subr.mxu0 %v977
    %1351 = vmatpush1.msra.mxu0 %v976
    %1352 = vmatprep.subr.mxu0 %v981
    %1353 = vmatpush1.msra.mxu0 %v980
    %1354 = vmatprep.subr.mxu0 %v985
    %1355 = vmatpush1.msra.mxu0 %v984
    %1356 = vmatprep.subr.mxu0 %v989
    %1357 = vmatpush1.msra.mxu0 %v988
    %1358 = vmatprep.subr.mxu0 %v993
    %1359 = vmatpush1.msra.mxu0 %v992
    %1360 = vmatprep.subr.mxu0 %v997
    %1361 = vmatpush1.msra.mxu0 %v996
    %1362 = vmatprep.subr.mxu0 0.0
    %1363 = vmatpush1.msra.mxu0 0.0
    %1364 = vmatprep.subr.mxu0 0.0
    %1365 = vmatpush1.msra.mxu0 0.0
    %1366 = vmatprep.subr.mxu0 0.0
    %1367 = vmatpush1.msra.mxu0 0.0
    %1368 = vmatprep.subr.mxu0 0.0
    %1369 = vmatpush1.msra.mxu0 0.0
    %1370 = vmatprep.subr.mxu0 0.0
    %1371 = vmatpush1.msra.mxu0 0.0
    %1372 = vmatprep.subr.mxu0 0.0
    %1373 = vmatpush1.msra.mxu0 0.0
    %1374 = vmatprep.subr.mxu0 0.0
    %1375 = vmatpush1.msra.mxu0 0.0
    %1376 = vmatprep.subr.mxu0 0.0
    %1377 = vmatpush1.msra.mxu0 0.0
    %1378 = vmatprep.subr.mxu0 0.0
    %1379 = vmatpush1.msra.mxu0 0.0
    %1380 = vmatprep.subr.mxu0 0.0
    %1381 = vmatpush1.msra.mxu0 0.0
    %1382 = vmatprep.subr.mxu0 0.0
    %1383 = vmatpush1.msra.mxu0 0.0
    %1384 = vmatprep.subr.mxu0 0.0
    %1385 = vmatpush1.msra.mxu0 0.0
    %1386 = vmatprep.subr.mxu0 0.0
    %1387 = vmatpush1.msra.mxu0 0.0
    %1388 = vmatprep.subr.mxu0 0.0
    %1389 = vmatpush1.msra.mxu0 0.0
    %1390 = vmatprep.subr.mxu0 0.0
    %1391 = vmatpush1.msra.mxu0 0.0
    %1392 = vmatprep.subr.mxu0 0.0
    %1393 = vmatpush1.msra.mxu0 0.0
    %1394 = vmatprep.mubr.f32.mxu0 0.0
    %1395 = vmatmul.mubr.f32.gmra.mrb[0].mxu0 %v845
    %v1396 = vpop.f32.mrb[0].mxu0
    %v1397 = vadd.f32 0.0, %v1396
    %v1398 = vpop.f32.mrb[0].mxu0
    %v1399 = vadd.f32 0.0, %v1398
    %1400 = vdwg.mxu0
    %v1401 = vadd.f32 %v1184, %v1326
    %v1402 = vadd.f32 %v1186, %v1328
    %v1403 = vadd.f32 %v1255, %v1397
    %v1404 = vadd.f32 %v1257, %v1399
    %v1406 = vlaneseq
    %v1407 = vshrl.u32 %v1406, 7
    %v1408 = vsub.s32 0, %v1407
    %v1409 = vrot.slane %v999, %v1408
    %v1410 = vlaneseq
    %v1411 = vshrl.u32 %v1410, 7
    %v1412 = vsub.s32 1, %v1411
    %v1413 = vrot.slane %v999, %v1412
    %v1414 = vlaneseq
    %v1415 = vshrl.u32 %v1414, 7
    %v1416 = vsub.s32 2, %v1415
    %v1417 = vrot.slane %v999, %v1416
    %v1418 = vlaneseq
    %v1419 = vshrl.u32 %v1418, 7
    %v1420 = vsub.s32 3, %v1419
    %v1421 = vrot.slane %v999, %v1420
    %v1426 = vadd.f32 %v1401, %v1409
    %v1427 = vadd.f32 %v1402, %v1413
    %v1428 = vadd.f32 %v1403, %v1417
    %v1429 = vadd.f32 %v1404, %v1421
    %v1430 = vxor.u32 %v1426, 2147483648
    %v1431 = vmul.f32 %v1430, 1.442695
    %v1432 = vpow.pop %v1431
    %v1433 = vadd.f32 %v1432, 1.0
    %v1434 = vrcp.pop %v1433
    %v1435 = vmul.f32 1.0, %v1434
    %v1436 = vxor.u32 %v1427, 2147483648
    %v1437 = vmul.f32 %v1436, 1.442695
    %v1438 = vpow.pop %v1437
    %v1439 = vadd.f32 %v1438, 1.0
    %v1440 = vrcp.pop %v1439
    %v1441 = vmul.f32 1.0, %v1440
    %v1442 = vtanh.pop %v1428
    %v1443 = vxor.u32 %v1429, 2147483648
    %v1444 = vmul.f32 %v1443, 1.442695
    %v1445 = vpow.pop %v1444
    %v1446 = vadd.f32 %v1445, 1.0
    %v1447 = vrcp.pop %v1446
    %v1448 = vmul.f32 1.0, %v1447
    %v1449 = vmul.f32 %v1441, %v846
    %v1450 = vmul.f32 %v1435, %v1442
    %v1451 = vadd.f32 %v1449, %v1450
    %v1452 = vtanh.pop %v1451
    %v1453 = vmul.f32 %v1448, %v1452
    %v1455 = vlaneseq
    %v1456 = vshrl.u32 %v1455, 7
    %v1457 = vsub.s32 0, %v1456
    %v1458 = vrot.slane %v1018, %v1457
    %1460 = vmatprep.subr.mxu0 0.0
    %1461 = vmatpush1.msra.mxu0 %v1001
    %1462 = vmatprep.subr.mxu0 0.0
    %1463 = vmatpush1.msra.mxu0 %v1002
    %1464 = vmatprep.subr.mxu0 0.0
    %1465 = vmatpush1.msra.mxu0 %v1003
    %1466 = vmatprep.subr.mxu0 0.0
    %1467 = vmatpush1.msra.mxu0 %v1004
    %1468 = vmatprep.subr.mxu0 0.0
    %1469 = vmatpush1.msra.mxu0 %v1005
    %1470 = vmatprep.subr.mxu0 0.0
    %1471 = vmatpush1.msra.mxu0 %v1006
    %1472 = vmatprep.subr.mxu0 0.0
    %1473 = vmatpush1.msra.mxu0 %v1007
    %1474 = vmatprep.subr.mxu0 0.0
    %1475 = vmatpush1.msra.mxu0 %v1008
    %1476 = vmatprep.subr.mxu0 0.0
    %1477 = vmatpush1.msra.mxu0 %v1009
    %1478 = vmatprep.subr.mxu0 0.0
    %1479 = vmatpush1.msra.mxu0 %v1010
    %1480 = vmatprep.subr.mxu0 0.0
    %1481 = vmatpush1.msra.mxu0 %v1011
    %1482 = vmatprep.subr.mxu0 0.0
    %1483 = vmatpush1.msra.mxu0 %v1012
    %1484 = vmatprep.subr.mxu0 0.0
    %1485 = vmatpush1.msra.mxu0 %v1013
    %1486 = vmatprep.subr.mxu0 0.0
    %1487 = vmatpush1.msra.mxu0 %v1014
    %1488 = vmatprep.subr.mxu0 0.0
    %1489 = vmatpush1.msra.mxu0 %v1015
    %1490 = vmatprep.subr.mxu0 0.0
    %1491 = vmatpush1.msra.mxu0 %v1016
    %1492 = vmatprep.subr.mxu0 0.0
    %1493 = vmatpush1.msra.mxu0 0.0
    %1494 = vmatprep.subr.mxu0 0.0
    %1495 = vmatpush1.msra.mxu0 0.0
    %1496 = vmatprep.subr.mxu0 0.0
    %1497 = vmatpush1.msra.mxu0 0.0
    %1498 = vmatprep.subr.mxu0 0.0
    %1499 = vmatpush1.msra.mxu0 0.0
    %1500 = vmatprep.subr.mxu0 0.0
    %1501 = vmatpush1.msra.mxu0 0.0
    %1502 = vmatprep.subr.mxu0 0.0
    %1503 = vmatpush1.msra.mxu0 0.0
    %1504 = vmatprep.subr.mxu0 0.0
    %1505 = vmatpush1.msra.mxu0 0.0
    %1506 = vmatprep.subr.mxu0 0.0
    %1507 = vmatpush1.msra.mxu0 0.0
    %1508 = vmatprep.subr.mxu0 0.0
    %1509 = vmatpush1.msra.mxu0 0.0
    %1510 = vmatprep.subr.mxu0 0.0
    %1511 = vmatpush1.msra.mxu0 0.0
    %1512 = vmatprep.subr.mxu0 0.0
    %1513 = vmatpush1.msra.mxu0 0.0
    %1514 = vmatprep.subr.mxu0 0.0
    %1515 = vmatpush1.msra.mxu0 0.0
    %1516 = vmatprep.subr.mxu0 0.0
    %1517 = vmatpush1.msra.mxu0 0.0
    %1518 = vmatprep.subr.mxu0 0.0
    %1519 = vmatpush1.msra.mxu0 0.0
    %1520 = vmatprep.subr.mxu0 0.0
    %1521 = vmatpush1.msra.mxu0 0.0
    %1522 = vmatprep.subr.mxu0 0.0
    %1523 = vmatpush1.msra.mxu0 0.0
    %1524 = vmatprep.mubr.f32.mxu0 0.0
    %1525 = vmatmul.mubr.f32.gmra.mrb[0].mxu0 %v1453
    %v1526 = vpop.f32.mrb[0].mxu0
    %v1527 = vadd.f32 %v1458, %v1526
    %v1528 = vpop.f32.mrb[0].mxu0
    %1529 = vdwg.mxu0
    %v1530 = vld [vmem:[%s3] sm:$0xff]
    %v1531 = vld [vmem:[#allocation15] sm:$0xff]
    %v1532 = vld [vmem:[#allocation15 + $0x8] sm:$0xff]
    %v1533 = vld [vmem:[#allocation15 + $0x10] sm:$0xff]
    %v1534 = vld [vmem:[#allocation15 + $0x18] sm:$0xff]
    %v1535 = vld [vmem:[#allocation15 + $0x20] sm:$0xff]
    %v1536 = vld [vmem:[#allocation15 + $0x28] sm:$0xff]
    %v1537 = vld [vmem:[#allocation15 + $0x30] sm:$0xff]
    %v1538 = vld [vmem:[#allocation15 + $0x38] sm:$0xff]
    %v1539 = vld [vmem:[#allocation15 + $0x40] sm:$0xff]
    %v1540 = vld [vmem:[#allocation15 + $0x48] sm:$0xff]
    %v1541 = vld [vmem:[#allocation15 + $0x50] sm:$0xff]
    %v1542 = vld [vmem:[#allocation15 + $0x58] sm:$0xff]
    %v1543 = vld [vmem:[#allocation15 + $0x60] sm:$0xff]
    %v1544 = vld [vmem:[#allocation15 + $0x68] sm:$0xff]
    %v1545 = vld [vmem:[#allocation15 + $0x70] sm:$0xff]
    %v1546 = vld [vmem:[#allocation15 + $0x78] sm:$0xff]
    %1547 = vmatprep.subr.mxu0 0.0
    %1548 = vmatpush1.msra.mxu0 %v1531
    %1549 = vmatprep.subr.mxu0 0.0
    %1550 = vmatpush1.msra.mxu0 %v1532
    %1551 = vmatprep.subr.mxu0 0.0
    %1552 = vmatpush1.msra.mxu0 %v1533
    %1553 = vmatprep.subr.mxu0 0.0
    %1554 = vmatpush1.msra.mxu0 %v1534
    %1555 = vmatprep.subr.mxu0 0.0
    %1556 = vmatpush1.msra.mxu0 %v1535
    %1557 = vmatprep.subr.mxu0 0.0
    %1558 = vmatpush1.msra.mxu0 %v1536
    %1559 = vmatprep.subr.mxu0 0.0
    %1560 = vmatpush1.msra.mxu0 %v1537
    %1561 = vmatprep.subr.mxu0 0.0
    %1562 = vmatpush1.msra.mxu0 %v1538
    %1563 = vmatprep.subr.mxu0 0.0
    %1564 = vmatpush1.msra.mxu0 %v1539
    %1565 = vmatprep.subr.mxu0 0.0
    %1566 = vmatpush1.msra.mxu0 %v1540
    %1567 = vmatprep.subr.mxu0 0.0
    %1568 = vmatpush1.msra.mxu0 %v1541
    %1569 = vmatprep.subr.mxu0 0.0
    %1570 = vmatpush1.msra.mxu0 %v1542
    %1571 = vmatprep.subr.mxu0 0.0
    %1572 = vmatpush1.msra.mxu0 %v1543
    %1573 = vmatprep.subr.mxu0 0.0
    %1574 = vmatpush1.msra.mxu0 %v1544
    %1575 = vmatprep.subr.mxu0 0.0
    %1576 = vmatpush1.msra.mxu0 %v1545
    %1577 = vmatprep.subr.mxu0 0.0
    %1578 = vmatpush1.msra.mxu0 %v1546
    %1579 = vmatprep.subr.mxu0 0.0
    %1580 = vmatpush1.msra.mxu0 0.0
    %1581 = vmatprep.subr.mxu0 0.0
    %1582 = vmatpush1.msra.mxu0 0.0
    %1583 = vmatprep.subr.mxu0 0.0
    %1584 = vmatpush1.msra.mxu0 0.0
    %1585 = vmatprep.subr.mxu0 0.0
    %1586 = vmatpush1.msra.mxu0 0.0
    %1587 = vmatprep.subr.mxu0 0.0
    %1588 = vmatpush1.msra.mxu0 0.0
    %1589 = vmatprep.subr.mxu0 0.0
    %1590 = vmatpush1.msra.mxu0 0.0
    %1591 = vmatprep.subr.mxu0 0.0
    %1592 = vmatpush1.msra.mxu0 0.0
    %1593 = vmatprep.subr.mxu0 0.0
    %1594 = vmatpush1.msra.mxu0 0.0
    %1595 = vmatprep.subr.mxu0 0.0
    %1596 = vmatpush1.msra.mxu0 0.0
    %1597 = vmatprep.subr.mxu0 0.0
    %1598 = vmatpush1.msra.mxu0 0.0
    %1599 = vmatprep.subr.mxu0 0.0
    %1600 = vmatpush1.msra.mxu0 0.0
    %1601 = vmatprep.subr.mxu0 0.0
    %1602 = vmatpush1.msra.mxu0 0.0
    %1603 = vmatprep.subr.mxu0 0.0
    %1604 = vmatpush1.msra.mxu0 0.0
    %1605 = vmatprep.subr.mxu0 0.0
    %1606 = vmatpush1.msra.mxu0 0.0
    %1607 = vmatprep.subr.mxu0 0.0
    %1608 = vmatpush1.msra.mxu0 0.0
    %1609 = vmatprep.subr.mxu0 0.0
    %1610 = vmatpush1.msra.mxu0 0.0
    %1611 = vmatprep.mubr.f32.mxu0 0.0
    %1612 = vmatmul.mubr.f32.gmra.mrb[0].mxu0 %v1530
    %v1613 = vpop.f32.mrb[0].mxu0
    %v1614 = vadd.f32 0.0, %v1613
    %v1615 = vpop.f32.mrb[0].mxu0
    %1616 = vdwg.mxu0
    %v1617 = vmul.f32 %v1614, %v841
    %v1618 = vlaneseq
    %v1619 = vand.u32 %v1618, 127
    %vm1620 = vcmp.lt.s32.totalorder %v1619, 8
    %v1621 = vsel %vm1620, %v1617, -1e+30
    %1622 = vmax.xlane.f32.xlu0 %v1621
    %v1623 = vpop.xlane.xlu0 %1622
    %v1624 = vsub.f32 %v1621, %v1623
    %v1625 = vmul.f32 %v1624, 1.442695
    %v1626 = vpow.pop %v1625
    %1627 = vadd.xlane.f32.xlu0 %v1626
    %v1628 = vpop.xlane.xlu0 %1627
    %v1629 = vrcp.pop %v1628
    %v1630 = vmul.f32 %v1626, %v1629
    %1631 = vst [vmem:[#allocation16] sm:$0xff] %v1630
    %1632 = vst [vmem:[#allocation17] sm:$0xff] %v1527
    %1633 = vst [vmem:[#allocation19] sm:$0xff] %v767
    %1634 = vst [vmem:[#allocation20] sm:$0xff] %v765
    %1635 = vst [vmem:[#allocation22] sm:$0xff] %v1453
    %1636 = vst [vmem:[#allocation23] sm:$0xff] %v1451
    // Predicated region
    $region94: #{tpu_custom_call.1} parent=1 // pred_check
      _
    $region95: #{tpu_custom_call.1} parent=1 // pred_check_branch
      %1638 = sbr.rel (0) target = $region97
    $region96: #{tpu_custom_call.1} parent=1 // pred_region
      %s1640 = ssub.s32 128, 128
      %1641 = vsyncadd [#allocation6], %s1640
      %s1643 = sshll.u32 [#allocation16], 4
      %s1644 = int_to_ptr.vmem [resolvable:$true] %s1643
      %1646 = dma.vmem_to_hbm [thread:$0]  %s1644, 128, %s17, [#allocation6]
    $region97: #{tpu_custom_call.1} parent=1 // pred_fallthru
      _
    // Predicated region
    $region98: #{tpu_custom_call.1} parent=1 // pred_check
      _
    $region99: #{tpu_custom_call.1} parent=1 // pred_check_branch
      %1648 = sbr.rel (0) target = $region101
    $region100: #{tpu_custom_call.1} parent=1 // pred_region
      %s1650 = ssub.s32 128, 128
      %1651 = vsyncadd [#allocation18], %s1650
      %s1653 = sshll.u32 [#allocation17], 4
      %s1654 = int_to_ptr.vmem [resolvable:$true] %s1653
      %1656 = dma.vmem_to_hbm [thread:$0]  %s1654, 128, %s18, [#allocation18]
    $region101: #{tpu_custom_call.1} parent=1 // pred_fallthru
      _
    // Predicated region
    $region102: #{tpu_custom_call.1} parent=1 // pred_check
      _
    $region103: #{tpu_custom_call.1} parent=1 // pred_check_branch
      %1658 = sbr.rel (0) target = $region105
    $region104: #{tpu_custom_call.1} parent=1 // pred_region
      %s1660 = ssub.s32 128, 128
      %1661 = vsyncadd [#allocation18], %s1660
      %s1663 = sshll.u32 [#allocation19], 4
      %s1664 = int_to_ptr.vmem [resolvable:$true] %s1663
      %1666 = dma.vmem_to_hbm [thread:$0]  %s1664, 128, %s19, [#allocation18]
    $region105: #{tpu_custom_call.1} parent=1 // pred_fallthru
      _
    // Predicated region
    $region106: #{tpu_custom_call.1} parent=1 // pred_check
      _
    $region107: #{tpu_custom_call.1} parent=1 // pred_check_branch
      %1668 = sbr.rel (0) target = $region109
    $region108: #{tpu_custom_call.1} parent=1 // pred_region
      %s1670 = ssub.s32 128, 128
      %1671 = vsyncadd [#allocation21], %s1670
      %s1673 = sshll.u32 [#allocation20], 4
      %s1674 = int_to_ptr.vmem [resolvable:$true] %s1673
      %1676 = dma.vmem_to_hbm [thread:$0]  %s1674, 128, %s20, [#allocation21]
    $region109: #{tpu_custom_call.1} parent=1 // pred_fallthru
      _
    // Predicated region
    $region110: #{tpu_custom_call.1} parent=1 // pred_check
      _
    $region111: #{tpu_custom_call.1} parent=1 // pred_check_branch
      %1678 = sbr.rel (0) target = $region113
    $region112: #{tpu_custom_call.1} parent=1 // pred_region
      %s1679 = sld [smem:[#allocation3]]
      %s1681 = ssub.s32 128, 128
      %1682 = vsyncadd [#allocation21], %s1681
      %s1683 = smul.addr %s1679, 128
      %s1684 = scalar_lea.hbm %s21, %s1683
      %s1686 = sshll.u32 [#allocation22], 4
      %s1687 = int_to_ptr.vmem [resolvable:$true] %s1686
      %1689 = dma.vmem_to_hbm [thread:$0]  %s1687, 128, %s1684, [#allocation21]
    $region113: #{tpu_custom_call.1} parent=1 // pred_fallthru
      _
    // Predicated region
    $region114: #{tpu_custom_call.1} parent=1 // pred_check
      _
    $region115: #{tpu_custom_call.1} parent=1 // pred_check_branch
      %1691 = sbr.rel (0) target = $region117
    $region116: #{tpu_custom_call.1} parent=1 // pred_region
      %s1692 = sld [smem:[#allocation3]]
      %s1694 = ssub.s32 128, 128
      %1695 = vsyncadd [#allocation24], %s1694
      %s1696 = smul.addr %s1692, 128
      %s1697 = scalar_lea.hbm %s22, %s1696
      %s1699 = sshll.u32 [#allocation23], 4
      %s1700 = int_to_ptr.vmem [resolvable:$true] %s1699
      %1702 = dma.vmem_to_hbm [thread:$0]  %s1700, 128, %s1697, [#allocation24]
    $region117: #{tpu_custom_call.1} parent=1 // pred_fallthru
      _
    // Predicated region
    $region118: #{tpu_custom_call.1} parent=1 // pred_check
      _
    $region119: #{tpu_custom_call.1} parent=1 // pred_check_branch
      %1704 = sbr.rel (0) target = $region121
    $region120: #{tpu_custom_call.1} parent=1 // pred_region
      %1705 = dma.done [#allocation6], 128
    $region121: #{tpu_custom_call.1} parent=1 // pred_fallthru
      _
    // Predicated region
    $region122: #{tpu_custom_call.1} parent=1 // pred_check
      _
    $region123: #{tpu_custom_call.1} parent=1 // pred_check_branch
      %1707 = sbr.rel (0) target = $region125
    $region124: #{tpu_custom_call.1} parent=1 // pred_region
      %1708 = dma.done [#allocation18], 128
    $region125: #{tpu_custom_call.1} parent=1 // pred_fallthru
      _
    // Predicated region
    $region126: #{tpu_custom_call.1} parent=1 // pred_check
      _
    $region127: #{tpu_custom_call.1} parent=1 // pred_check_branch
      %1710 = sbr.rel (0) target = $region129
    $region128: #{tpu_custom_call.1} parent=1 // pred_region
      %1711 = dma.done [#allocation18], 128
    $region129: #{tpu_custom_call.1} parent=1 // pred_fallthru
      _
    // Predicated region
    $region130: #{tpu_custom_call.1} parent=1 // pred_check
      _
    $region131: #{tpu_custom_call.1} parent=1 // pred_check_branch
      %1713 = sbr.rel (0) target = $region133
    $region132: #{tpu_custom_call.1} parent=1 // pred_region
      %1714 = dma.done [#allocation21], 128
    $region133: #{tpu_custom_call.1} parent=1 // pred_fallthru
      _
    // Predicated region
    $region134: #{tpu_custom_call.1} parent=1 // pred_check
      _
    $region135: #{tpu_custom_call.1} parent=1 // pred_check_branch
      %1716 = sbr.rel (0) target = $region137
    $region136: #{tpu_custom_call.1} parent=1 // pred_region
      %1717 = dma.done [#allocation21], 128
    $region137: #{tpu_custom_call.1} parent=1 // pred_fallthru
      _
    // Predicated region
    $region138: #{tpu_custom_call.1} parent=1 // pred_check
      _
    $region139: #{tpu_custom_call.1} parent=1 // pred_check_branch
      %1719 = sbr.rel (0) target = $region141
    $region140: #{tpu_custom_call.1} parent=1 // pred_region
      %1720 = dma.done [#allocation24], 128
    $region141: #{tpu_custom_call.1} parent=1 // pred_fallthru
      _
    %1721 = vsyncpa [#allocation5], 1
    %1722 = vsyncpa [#allocation8], 1
    %1723 = vsyncpa [#allocation11], 1
    %1724 = vsyncpa [#allocation14], 1
    %1725 = vsyncpa [#allocation6], 1
    %1726 = vsyncpa [#allocation18], 1
    %1727 = vsyncpa [#allocation21], 1
    %1728 = vsyncpa [#allocation24], 1

</llo_original>
